<compile_context>
chip_gen: v7x
topology: tpu7x:2x2x1
jax: 0.10.0
libtpu: 0.0.40
codegen_flags: <defaults>
</compile_context>

<pallas_src>
import functools

import jax
import jax.numpy as jnp
from jax.experimental import pallas as pl
from jax.experimental.pallas import tpu as pltpu

CLAMP = 1.0  # soft clamp on the log-scale branch


# --------------------------------------------------------------------------
# Kernel: all CinnBlocks fused, operating on a (C, tp) channels-x-pixels slab.
# --------------------------------------------------------------------------
def _rsa_kernel(x_ref, cond_ref, wc_ref, bc_ref,
                fw1_ref, fw2_ref, fb2_ref,
                gw1_ref, sw2_ref, sb2_ref, tw2_ref, tb2_ref,
                y_ref, *, ch, nb, hidden, clamp, mm_dtype):
    x = x_ref[...].astype(jnp.float32)          # (C, tp)
    x1 = x[:ch, :]                              # (ch, tp)
    x2 = x[ch:, :]                              # (ch, tp)
    cond = cond_ref[...].astype(mm_dtype)       # (cc, tp)

    # Hoisted, loop-invariant cond contribution (+ first-layer biases) for the
    # first layer of every subnet of every block: one wide, MXU-filling matmul.
    cond_pre = jnp.dot(wc_ref[...], cond,
                       preferred_element_type=jnp.float32) + bc_ref[...]

    for blk in range(nb):                       # nb is small & static: unroll
        base = 3 * hidden * blk

        # ---- additive branch: y1 = x1 + F([x2, cond]) --------------------
        hf = jnp.dot(fw1_ref[blk], x2.astype(mm_dtype),
                     preferred_element_type=jnp.float32)
        hf = jnp.maximum(hf + cond_pre[base:base + hidden, :], 0.0)
        y1 = x1 + jnp.dot(fw2_ref[blk], hf.astype(mm_dtype),
                          preferred_element_type=jnp.float32) + fb2_ref[blk]

        # ---- affine branch: s = G([y1, cond]), t = H([y1, cond]) ---------
        hgh = jnp.dot(gw1_ref[blk], y1.astype(mm_dtype),
                      preferred_element_type=jnp.float32)
        hgh = jnp.maximum(
            hgh + cond_pre[base + hidden:base + 3 * hidden, :], 0.0)
        hg = hgh[:hidden, :].astype(mm_dtype)
        hh = hgh[hidden:, :].astype(mm_dtype)
        s = jnp.dot(sw2_ref[blk], hg,
                    preferred_element_type=jnp.float32) + sb2_ref[blk]
        t = jnp.dot(tw2_ref[blk], hh,
                    preferred_element_type=jnp.float32) + tb2_ref[blk]

        # element-wise math stays f32 (v5e has no bf16 VPU/EUP)
        y2 = x2 * jnp.exp(clamp * jnp.tanh(s)) + t
        x1, x2 = y1, y2

    # single lane-dense store of the packed (C, tp) output tile
    y_ref[...] = jnp.concatenate([x1, x2], axis=0).astype(y_ref.dtype)


# --------------------------------------------------------------------------
# Wrapper helpers
# --------------------------------------------------------------------------
def _choose_tp(hw, requested, batch):
    """Pixel-tile: multiple of 128; keep >=2 total grid steps when possible."""
    hw128 = ((hw + 127) // 128) * 128
    tp = max(128, min(((requested + 127) // 128) * 128, hw128))
    if batch == 1 and hw128 // tp < 2 and hw128 > 128:
        tp = max(128, ((hw128 // 2 + 127) // 128) * 128)
    return tp


def _pack_params(params_list, matmul_dtype):
    """Transpose to W@act orientation, stack per-block, hoist cond weights."""
    wc, bc = [], []
    fw1, fw2, fb2 = [], [], []
    gw1, sw2, sb2, tw2, tb2 = [], [], [], [], []
    for p in params_list:
        w1f, b1f, w2f, b2f = p["F"]
        w1g, b1g, w2g, b2g = p["G"]
        w1h, b1h, w2h, b2h = p["H"]
        ch = w2f.shape[1]

        # loop-invariant cond part of every first layer, rows ordered [F;G;H]
        wc.append(jnp.concatenate([w1f[ch:].T, w1g[ch:].T, w1h[ch:].T], axis=0))
        bc.append(jnp.concatenate([b1f.T, b1g.T, b1h.T], axis=0))

        fw1.append(w1f[:ch].T)                                   # (hidden, ch)
        fw2.append(w2f.T)                                        # (ch, hidden)
        fb2.append(b2f.T)                                        # (ch, 1)

        gw1.append(jnp.concatenate([w1g[:ch].T, w1h[:ch].T], 0))  # (2h, ch)
        sw2.append(w2g.T)
        sb2.append(b2g.T)
        tw2.append(w2h.T)
        tb2.append(b2h.T)

    f32 = jnp.float32
    return (
        jnp.concatenate(wc, axis=0).astype(matmul_dtype),  # (3*nb*h, cc)
        jnp.concatenate(bc, axis=0).astype(f32),            # (3*nb*h, 1)
        jnp.stack(fw1).astype(matmul_dtype),
        jnp.stack(fw2).astype(matmul_dtype),
        jnp.stack(fb2).astype(f32),
        jnp.stack(gw1).astype(matmul_dtype),
        jnp.stack(sw2).astype(matmul_dtype),
        jnp.stack(sb2).astype(f32),
        jnp.stack(tw2).astype(matmul_dtype),
        jnp.stack(tb2).astype(f32),
    )


def _weight_spec(arr):
    ndim = arr.ndim
    return pl.BlockSpec(arr.shape, lambda bi, pi: (0,) * ndim)


def rsa_forward(x, cond, params_list, *, tp=2048, matmul_dtype=jnp.bfloat16):
    """RSA.forward(x, cond, rev=False).  x: (B, C, H, W), cond: (B, Cc, H, W)."""
    b, c, h, w = x.shape
    cc = cond.shape[1]
    ch = c // 2
    nb = len(params_list)
    hidden = params_list[0]["F"][0].shape[1]
    hw = h * w

    # channels-on-sublanes / pixels-on-lanes: no transpose, just a reshape.
    x_p = x.reshape(b, c, hw)
    cond_p = cond.reshape(b, cc, hw)

    tp = _choose_tp(hw, tp, b)
    hwp = ((hw + tp - 1) // tp) * tp
    if hwp != hw:
        x_p = jnp.pad(x_p, ((0, 0), (0, 0), (0, hwp - hw)))
        cond_p = jnp.pad(cond_p, ((0, 0), (0, 0), (0, hwp - hw)))

    packed = _pack_params(params_list, matmul_dtype)

    def data_spec(width):
        return pl.BlockSpec((None, width, tp), lambda bi, pi: (bi, 0, pi))

    flops = 2 * b * hwp * nb * (3 * hidden * cc + 6 * hidden * ch)
    transcendentals = 2 * b * hwp * nb * ch
    bytes_accessed = int(
        x_p.size * x_p.dtype.itemsize
        + cond_p.size * cond_p.dtype.itemsize
        + b * c * hwp * x.dtype.itemsize
        + sum(int(a.size) * a.dtype.itemsize for a in packed))

    y = pl.pallas_call(
        functools.partial(_rsa_kernel, ch=ch, nb=nb, hidden=hidden,
                          clamp=CLAMP, mm_dtype=matmul_dtype),
        out_shape=jax.ShapeDtypeStruct((b, c, hwp), x.dtype),
        grid=(b, hwp // tp),
        in_specs=[data_spec(c), data_spec(cc)]
                 + [_weight_spec(a) for a in packed],
        out_specs=data_spec(c),
        compiler_params=pltpu.CompilerParams(
            dimension_semantics=("parallel", "parallel")),
        cost_estimate=pl.CostEstimate(
            flops=flops,
            transcendentals=transcendentals,
            bytes_accessed=bytes_accessed),
    )(x_p, cond_p, *packed)

    return y[..., :hw].reshape(b, c, h, w)


# --------------------------------------------------------------------------
# Pure-JAX reference (for correctness check)
# --------------------------------------------------------------------------
def rsa_reference(x, cond, params_list):
    b, c, h, w = x.shape
    ch = c // 2
    xr = jnp.transpose(x, (0, 2, 3, 1)).reshape(-1, c)
    cr = jnp.transpose(cond, (0, 2, 3, 1)).reshape(-1, cond.shape[1])
    x1, x2 = xr[:, :ch], xr[:, ch:]

    def subnet(a, p):
        w1, b1, w2, b2 = p
        return jnp.maximum(a @ w1 + b1, 0.0) @ w2 + b2

    for p in params_list:
        y1 = x1 + subnet(jnp.concatenate([x2, cr], -1), p["F"])
        s = subnet(jnp.concatenate([y1, cr], -1), p["G"])
        t = subnet(jnp.concatenate([y1, cr], -1), p["H"])
        x1, x2 = y1, x2 * jnp.exp(CLAMP * jnp.tanh(s)) + t
    out = jnp.concatenate([x1, x2], -1)
    return jnp.transpose(out.reshape(b, h, w, c), (0, 3, 1, 2))


def init_params(key, ch, cc, hidden, num_blocks):
    """Deterministic synthetic parameters for every CinnBlock subnet."""
    params_list = []
    for _ in range(num_blocks):
        p = {}
        for name in ("F", "G", "H"):
            key, k1, k2 = jax.random.split(key, 3)
            w1 = 0.1 * jax.random.normal(k1, (ch + cc, hidden), jnp.float32)
            b1 = jnp.zeros((1, hidden), jnp.float32)
            w2 = 0.1 * jax.random.normal(k2, (hidden, ch), jnp.float32)
            b2 = jnp.zeros((1, ch), jnp.float32)
            p[name] = (w1, b1, w2, b2)
        params_list.append(p)
    return params_list


if __name__ == "__main__":
    # Small shapes consistent with the module: even channel count for the split.
    B, C, H, W = 2, 4, 16, 16
    C_COND = 4
    HIDDEN = 32
    CINNB_NUMS = 2   # config['RSA']['struct']['basic']['cinnb_nums']

    key = jax.random.PRNGKey(0)
    kx, kc, kp = jax.random.split(key, 3)
    x = jax.random.normal(kx, (B, C, H, W), jnp.float32)
    cond = jax.random.normal(kc, (B, C_COND, H, W), jnp.float32)
    params_list = init_params(kp, C // 2, C_COND, HIDDEN, CINNB_NUMS)

    ref = jax.block_until_ready(rsa_reference(x, cond, params_list))

    # exact-precision path (f32 matmul operands)
    out_f32 = jax.block_until_ready(
        rsa_forward(x, cond, params_list, matmul_dtype=jnp.float32))
    assert out_f32.shape == (B, C, H, W), out_f32.shape
    assert jnp.allclose(out_f32, ref, rtol=1e-4, atol=1e-4), \
        float(jnp.max(jnp.abs(out_f32 - ref)))

    # performance path (bf16 matmul operands, f32 accumulation + elementwise)
    out_bf16 = jax.block_until_ready(rsa_forward(x, cond, params_list))
    assert out_bf16.shape == (B, C, H, W), out_bf16.shape
    assert jnp.allclose(out_bf16, ref, rtol=2e-2, atol=2e-2), \
        float(jnp.max(jnp.abs(out_bf16 - ref)))

    print("KERNEL_OK")
</pallas_src>

<mosaic_0001>
module attributes {stable_mosaic.version = 11 : i64} {
  func.func @_rsa_kernel(%arg0: i32, %arg1: i32, %arg2: memref<1x4x256xf32, #tpu.memory_space<vmem>>, %arg3: memref<1x4x256xf32, #tpu.memory_space<vmem>>, %arg4: memref<192x4xf32, #tpu.memory_space<vmem>>, %arg5: memref<192x1xf32, #tpu.memory_space<vmem>>, %arg6: memref<2x32x2xf32, #tpu.memory_space<vmem>>, %arg7: memref<2x2x32xf32, #tpu.memory_space<vmem>>, %arg8: memref<2x2x1xf32, #tpu.memory_space<vmem>>, %arg9: memref<2x64x2xf32, #tpu.memory_space<vmem>>, %arg10: memref<2x2x32xf32, #tpu.memory_space<vmem>>, %arg11: memref<2x2x1xf32, #tpu.memory_space<vmem>>, %arg12: memref<2x2x32xf32, #tpu.memory_space<vmem>>, %arg13: memref<2x2x1xf32, #tpu.memory_space<vmem>>, %arg14: memref<1x4x256xf32, #tpu.memory_space<vmem>>) attributes {dimension_semantics = [#tpu.dimension_semantics<parallel>, #tpu.dimension_semantics<parallel>], iteration_bounds = array<i64: 2, 1>, scalar_prefetch = 0 : i64, scratch_operands = 0 : i64, tpu.core_type = #tpu.core_type<tc>, window_params = [{transform_indices = @transform_0, window_bounds = array<i64: 1, 4, 256>}, {transform_indices = @transform_1, window_bounds = array<i64: 1, 4, 256>}, {pipeline_mode = #tpu.pipeline_mode<synchronous>, transform_indices = @transform_2, window_bounds = array<i64: 192, 4>}, {pipeline_mode = #tpu.pipeline_mode<synchronous>, transform_indices = @transform_3, window_bounds = array<i64: 192, 1>}, {pipeline_mode = #tpu.pipeline_mode<synchronous>, transform_indices = @transform_4, window_bounds = array<i64: 2, 32, 2>}, {pipeline_mode = #tpu.pipeline_mode<synchronous>, transform_indices = @transform_5, window_bounds = array<i64: 2, 2, 32>}, {pipeline_mode = #tpu.pipeline_mode<synchronous>, transform_indices = @transform_6, window_bounds = array<i64: 2, 2, 1>}, {pipeline_mode = #tpu.pipeline_mode<synchronous>, transform_indices = @transform_7, window_bounds = array<i64: 2, 64, 2>}, {pipeline_mode = #tpu.pipeline_mode<synchronous>, transform_indices = @transform_8, window_bounds = array<i64: 2, 2, 32>}, {pipeline_mode = #tpu.pipeline_mode<synchronous>, transform_indices = @transform_9, window_bounds = array<i64: 2, 2, 1>}, {pipeline_mode = #tpu.pipeline_mode<synchronous>, transform_indices = @transform_10, window_bounds = array<i64: 2, 2, 32>}, {pipeline_mode = #tpu.pipeline_mode<synchronous>, transform_indices = @transform_11, window_bounds = array<i64: 2, 2, 1>}, {transform_indices = @transform_12, window_bounds = array<i64: 1, 4, 256>}]} {
    %c0 = arith.constant 0 : index
    %c0_0 = arith.constant 0 : index
    %c0_1 = arith.constant 0 : index
    %0 = vector.load %arg2[%c0, %c0_0, %c0_1] : memref<1x4x256xf32, #tpu.memory_space<vmem>>, vector<1x4x256xf32>
    %1 = vector.shape_cast %0 : vector<1x4x256xf32> to vector<4x256xf32>
    %2 = vector.extract_strided_slice %1 {offsets = [0, 0], sizes = [2, 256], strides = [1, 1]} : vector<4x256xf32> to vector<2x256xf32>
    %3 = vector.extract_strided_slice %1 {offsets = [2, 0], sizes = [2, 256], strides = [1, 1]} : vector<4x256xf32> to vector<2x256xf32>
    %c0_2 = arith.constant 0 : index
    %c0_3 = arith.constant 0 : index
    %c0_4 = arith.constant 0 : index
    %4 = vector.load %arg3[%c0_2, %c0_3, %c0_4] : memref<1x4x256xf32, #tpu.memory_space<vmem>>, vector<1x4x256xf32>
    %5 = vector.shape_cast %4 : vector<1x4x256xf32> to vector<4x256xf32>
    %c0_5 = arith.constant 0 : index
    %c0_6 = arith.constant 0 : index
    %6 = vector.load %arg4[%c0_5, %c0_6] : memref<192x4xf32, #tpu.memory_space<vmem>>, vector<192x4xf32>
    %cst = arith.constant dense<0.000000e+00> : vector<192x256xf32>
    %7 = tpu.matmul %6, %5, %cst {dimension_numbers = #tpu.dot_dimension_numbers<[1], [0], [0], [1], [0, 0, 1, 1], [], []>} : vector<192x4xf32>, vector<4x256xf32>, vector<192x256xf32> -> vector<192x256xf32>
    %c0_7 = arith.constant 0 : index
    %c0_8 = arith.constant 0 : index
    %8 = vector.load %arg5[%c0_7, %c0_8] : memref<192x1xf32, #tpu.memory_space<vmem>>, vector<192x1xf32>
    %9 = vector.broadcast %8 : vector<192x1xf32> to vector<192x256xf32>
    %10 = arith.addf %7, %9 : vector<192x256xf32>
    %c0_9 = arith.constant 0 : index
    %c0_10 = arith.constant 0 : index
    %c0_11 = arith.constant 0 : index
    %11 = vector.load %arg6[%c0_9, %c0_10, %c0_11] : memref<2x32x2xf32, #tpu.memory_space<vmem>>, vector<1x32x2xf32>
    %12 = vector.shape_cast %11 : vector<1x32x2xf32> to vector<32x2xf32>
    %cst_12 = arith.constant dense<0.000000e+00> : vector<32x256xf32>
    %13 = tpu.matmul %12, %3, %cst_12 {dimension_numbers = #tpu.dot_dimension_numbers<[1], [0], [0], [1], [0, 0, 1, 1], [], []>} : vector<32x2xf32>, vector<2x256xf32>, vector<32x256xf32> -> vector<32x256xf32>
    %14 = vector.extract_strided_slice %10 {offsets = [0, 0], sizes = [32, 256], strides = [1, 1]} : vector<192x256xf32> to vector<32x256xf32>
    %15 = arith.addf %13, %14 : vector<32x256xf32>
    %cst_13 = arith.constant 0.000000e+00 : f32
    %16 = vector.broadcast %cst_13 : f32 to vector<32x256xf32>
    %17 = arith.maximumf %15, %16 : vector<32x256xf32>
    %c0_14 = arith.constant 0 : index
    %c0_15 = arith.constant 0 : index
    %c0_16 = arith.constant 0 : index
    %18 = vector.load %arg7[%c0_14, %c0_15, %c0_16] : memref<2x2x32xf32, #tpu.memory_space<vmem>>, vector<1x2x32xf32>
    %19 = vector.shape_cast %18 : vector<1x2x32xf32> to vector<2x32xf32>
    %cst_17 = arith.constant dense<0.000000e+00> : vector<2x256xf32>
    %20 = tpu.matmul %19, %17, %cst_17 {dimension_numbers = #tpu.dot_dimension_numbers<[1], [0], [0], [1], [0, 0, 1, 1], [], []>} : vector<2x32xf32>, vector<32x256xf32>, vector<2x256xf32> -> vector<2x256xf32>
    %21 = arith.addf %2, %20 : vector<2x256xf32>
    %c0_18 = arith.constant 0 : index
    %c0_19 = arith.constant 0 : index
    %c0_20 = arith.constant 0 : index
    %22 = vector.load %arg8[%c0_18, %c0_19, %c0_20] : memref<2x2x1xf32, #tpu.memory_space<vmem>>, vector<1x2x1xf32>
    %23 = vector.shape_cast %22 : vector<1x2x1xf32> to vector<2x1xf32>
    %24 = vector.broadcast %23 : vector<2x1xf32> to vector<2x256xf32>
    %25 = arith.addf %21, %24 : vector<2x256xf32>
    %c0_21 = arith.constant 0 : index
    %c0_22 = arith.constant 0 : index
    %c0_23 = arith.constant 0 : index
    %26 = vector.load %arg9[%c0_21, %c0_22, %c0_23] : memref<2x64x2xf32, #tpu.memory_space<vmem>>, vector<1x64x2xf32>
    %27 = vector.shape_cast %26 : vector<1x64x2xf32> to vector<64x2xf32>
    %cst_24 = arith.constant dense<0.000000e+00> : vector<64x256xf32>
    %28 = tpu.matmul %27, %25, %cst_24 {dimension_numbers = #tpu.dot_dimension_numbers<[1], [0], [0], [1], [0, 0, 1, 1], [], []>} : vector<64x2xf32>, vector<2x256xf32>, vector<64x256xf32> -> vector<64x256xf32>
    %29 = vector.extract_strided_slice %10 {offsets = [32, 0], sizes = [64, 256], strides = [1, 1]} : vector<192x256xf32> to vector<64x256xf32>
    %30 = arith.addf %28, %29 : vector<64x256xf32>
    %cst_25 = arith.constant 0.000000e+00 : f32
    %31 = vector.broadcast %cst_25 : f32 to vector<64x256xf32>
    %32 = arith.maximumf %30, %31 : vector<64x256xf32>
    %33 = vector.extract_strided_slice %32 {offsets = [0, 0], sizes = [32, 256], strides = [1, 1]} : vector<64x256xf32> to vector<32x256xf32>
    %34 = vector.extract_strided_slice %32 {offsets = [32, 0], sizes = [32, 256], strides = [1, 1]} : vector<64x256xf32> to vector<32x256xf32>
    %c0_26 = arith.constant 0 : index
    %c0_27 = arith.constant 0 : index
    %c0_28 = arith.constant 0 : index
    %35 = vector.load %arg10[%c0_26, %c0_27, %c0_28] : memref<2x2x32xf32, #tpu.memory_space<vmem>>, vector<1x2x32xf32>
    %36 = vector.shape_cast %35 : vector<1x2x32xf32> to vector<2x32xf32>
    %cst_29 = arith.constant dense<0.000000e+00> : vector<2x256xf32>
    %37 = tpu.matmul %36, %33, %cst_29 {dimension_numbers = #tpu.dot_dimension_numbers<[1], [0], [0], [1], [0, 0, 1, 1], [], []>} : vector<2x32xf32>, vector<32x256xf32>, vector<2x256xf32> -> vector<2x256xf32>
    %c0_30 = arith.constant 0 : index
    %c0_31 = arith.constant 0 : index
    %c0_32 = arith.constant 0 : index
    %38 = vector.load %arg11[%c0_30, %c0_31, %c0_32] : memref<2x2x1xf32, #tpu.memory_space<vmem>>, vector<1x2x1xf32>
    %39 = vector.shape_cast %38 : vector<1x2x1xf32> to vector<2x1xf32>
    %40 = vector.broadcast %39 : vector<2x1xf32> to vector<2x256xf32>
    %41 = arith.addf %37, %40 : vector<2x256xf32>
    %c0_33 = arith.constant 0 : index
    %c0_34 = arith.constant 0 : index
    %c0_35 = arith.constant 0 : index
    %42 = vector.load %arg12[%c0_33, %c0_34, %c0_35] : memref<2x2x32xf32, #tpu.memory_space<vmem>>, vector<1x2x32xf32>
    %43 = vector.shape_cast %42 : vector<1x2x32xf32> to vector<2x32xf32>
    %cst_36 = arith.constant dense<0.000000e+00> : vector<2x256xf32>
    %44 = tpu.matmul %43, %34, %cst_36 {dimension_numbers = #tpu.dot_dimension_numbers<[1], [0], [0], [1], [0, 0, 1, 1], [], []>} : vector<2x32xf32>, vector<32x256xf32>, vector<2x256xf32> -> vector<2x256xf32>
    %c0_37 = arith.constant 0 : index
    %c0_38 = arith.constant 0 : index
    %c0_39 = arith.constant 0 : index
    %45 = vector.load %arg13[%c0_37, %c0_38, %c0_39] : memref<2x2x1xf32, #tpu.memory_space<vmem>>, vector<1x2x1xf32>
    %46 = vector.shape_cast %45 : vector<1x2x1xf32> to vector<2x1xf32>
    %47 = vector.broadcast %46 : vector<2x1xf32> to vector<2x256xf32>
    %48 = arith.addf %44, %47 : vector<2x256xf32>
    %49 = math.tanh %41 : vector<2x256xf32>
    %cst_40 = arith.constant 1.000000e+00 : f32
    %50 = vector.broadcast %cst_40 : f32 to vector<2x256xf32>
    %51 = arith.mulf %50, %49 : vector<2x256xf32>
    %52 = math.exp %51 : vector<2x256xf32>
    %53 = arith.mulf %3, %52 : vector<2x256xf32>
    %54 = arith.addf %53, %48 : vector<2x256xf32>
    %c1 = arith.constant 1 : index
    %c0_41 = arith.constant 0 : index
    %c0_42 = arith.constant 0 : index
    %55 = vector.load %arg6[%c1, %c0_41, %c0_42] : memref<2x32x2xf32, #tpu.memory_space<vmem>>, vector<1x32x2xf32>
    %56 = vector.shape_cast %55 : vector<1x32x2xf32> to vector<32x2xf32>
    %cst_43 = arith.constant dense<0.000000e+00> : vector<32x256xf32>
    %57 = tpu.matmul %56, %54, %cst_43 {dimension_numbers = #tpu.dot_dimension_numbers<[1], [0], [0], [1], [0, 0, 1, 1], [], []>} : vector<32x2xf32>, vector<2x256xf32>, vector<32x256xf32> -> vector<32x256xf32>
    %58 = vector.extract_strided_slice %10 {offsets = [96, 0], sizes = [32, 256], strides = [1, 1]} : vector<192x256xf32> to vector<32x256xf32>
    %59 = arith.addf %57, %58 : vector<32x256xf32>
    %cst_44 = arith.constant 0.000000e+00 : f32
    %60 = vector.broadcast %cst_44 : f32 to vector<32x256xf32>
    %61 = arith.maximumf %59, %60 : vector<32x256xf32>
    %c1_45 = arith.constant 1 : index
    %c0_46 = arith.constant 0 : index
    %c0_47 = arith.constant 0 : index
    %62 = vector.load %arg7[%c1_45, %c0_46, %c0_47] : memref<2x2x32xf32, #tpu.memory_space<vmem>>, vector<1x2x32xf32>
    %63 = vector.shape_cast %62 : vector<1x2x32xf32> to vector<2x32xf32>
    %cst_48 = arith.constant dense<0.000000e+00> : vector<2x256xf32>
    %64 = tpu.matmul %63, %61, %cst_48 {dimension_numbers = #tpu.dot_dimension_numbers<[1], [0], [0], [1], [0, 0, 1, 1], [], []>} : vector<2x32xf32>, vector<32x256xf32>, vector<2x256xf32> -> vector<2x256xf32>
    %65 = arith.addf %25, %64 : vector<2x256xf32>
    %c1_49 = arith.constant 1 : index
    %c0_50 = arith.constant 0 : index
    %c0_51 = arith.constant 0 : index
    %66 = vector.load %arg8[%c1_49, %c0_50, %c0_51] : memref<2x2x1xf32, #tpu.memory_space<vmem>>, vector<1x2x1xf32>
    %67 = vector.shape_cast %66 : vector<1x2x1xf32> to vector<2x1xf32>
    %68 = vector.broadcast %67 : vector<2x1xf32> to vector<2x256xf32>
    %69 = arith.addf %65, %68 : vector<2x256xf32>
    %c1_52 = arith.constant 1 : index
    %c0_53 = arith.constant 0 : index
    %c0_54 = arith.constant 0 : index
    %70 = vector.load %arg9[%c1_52, %c0_53, %c0_54] : memref<2x64x2xf32, #tpu.memory_space<vmem>>, vector<1x64x2xf32>
    %71 = vector.shape_cast %70 : vector<1x64x2xf32> to vector<64x2xf32>
    %cst_55 = arith.constant dense<0.000000e+00> : vector<64x256xf32>
    %72 = tpu.matmul %71, %69, %cst_55 {dimension_numbers = #tpu.dot_dimension_numbers<[1], [0], [0], [1], [0, 0, 1, 1], [], []>} : vector<64x2xf32>, vector<2x256xf32>, vector<64x256xf32> -> vector<64x256xf32>
    %73 = vector.extract_strided_slice %10 {offsets = [128, 0], sizes = [64, 256], strides = [1, 1]} : vector<192x256xf32> to vector<64x256xf32>
    %74 = arith.addf %72, %73 : vector<64x256xf32>
    %cst_56 = arith.constant 0.000000e+00 : f32
    %75 = vector.broadcast %cst_56 : f32 to vector<64x256xf32>
    %76 = arith.maximumf %74, %75 : vector<64x256xf32>
    %77 = vector.extract_strided_slice %76 {offsets = [0, 0], sizes = [32, 256], strides = [1, 1]} : vector<64x256xf32> to vector<32x256xf32>
    %78 = vector.extract_strided_slice %76 {offsets = [32, 0], sizes = [32, 256], strides = [1, 1]} : vector<64x256xf32> to vector<32x256xf32>
    %c1_57 = arith.constant 1 : index
    %c0_58 = arith.constant 0 : index
    %c0_59 = arith.constant 0 : index
    %79 = vector.load %arg10[%c1_57, %c0_58, %c0_59] : memref<2x2x32xf32, #tpu.memory_space<vmem>>, vector<1x2x32xf32>
    %80 = vector.shape_cast %79 : vector<1x2x32xf32> to vector<2x32xf32>
    %cst_60 = arith.constant dense<0.000000e+00> : vector<2x256xf32>
    %81 = tpu.matmul %80, %77, %cst_60 {dimension_numbers = #tpu.dot_dimension_numbers<[1], [0], [0], [1], [0, 0, 1, 1], [], []>} : vector<2x32xf32>, vector<32x256xf32>, vector<2x256xf32> -> vector<2x256xf32>
    %c1_61 = arith.constant 1 : index
    %c0_62 = arith.constant 0 : index
    %c0_63 = arith.constant 0 : index
    %82 = vector.load %arg11[%c1_61, %c0_62, %c0_63] : memref<2x2x1xf32, #tpu.memory_space<vmem>>, vector<1x2x1xf32>
    %83 = vector.shape_cast %82 : vector<1x2x1xf32> to vector<2x1xf32>
    %84 = vector.broadcast %83 : vector<2x1xf32> to vector<2x256xf32>
    %85 = arith.addf %81, %84 : vector<2x256xf32>
    %c1_64 = arith.constant 1 : index
    %c0_65 = arith.constant 0 : index
    %c0_66 = arith.constant 0 : index
    %86 = vector.load %arg12[%c1_64, %c0_65, %c0_66] : memref<2x2x32xf32, #tpu.memory_space<vmem>>, vector<1x2x32xf32>
    %87 = vector.shape_cast %86 : vector<1x2x32xf32> to vector<2x32xf32>
    %cst_67 = arith.constant dense<0.000000e+00> : vector<2x256xf32>
    %88 = tpu.matmul %87, %78, %cst_67 {dimension_numbers = #tpu.dot_dimension_numbers<[1], [0], [0], [1], [0, 0, 1, 1], [], []>} : vector<2x32xf32>, vector<32x256xf32>, vector<2x256xf32> -> vector<2x256xf32>
    %c1_68 = arith.constant 1 : index
    %c0_69 = arith.constant 0 : index
    %c0_70 = arith.constant 0 : index
    %89 = vector.load %arg13[%c1_68, %c0_69, %c0_70] : memref<2x2x1xf32, #tpu.memory_space<vmem>>, vector<1x2x1xf32>
    %90 = vector.shape_cast %89 : vector<1x2x1xf32> to vector<2x1xf32>
    %91 = vector.broadcast %90 : vector<2x1xf32> to vector<2x256xf32>
    %92 = arith.addf %88, %91 : vector<2x256xf32>
    %93 = math.tanh %85 : vector<2x256xf32>
    %cst_71 = arith.constant 1.000000e+00 : f32
    %94 = vector.broadcast %cst_71 : f32 to vector<2x256xf32>
    %95 = arith.mulf %94, %93 : vector<2x256xf32>
    %96 = math.exp %95 : vector<2x256xf32>
    %97 = arith.mulf %54, %96 : vector<2x256xf32>
    %98 = arith.addf %97, %92 : vector<2x256xf32>
    %99 = tpu.concatenate %69, %98 in 0 : vector<2x256xf32>, vector<2x256xf32> -> vector<4x256xf32>
    %c0_72 = arith.constant 0 : index
    %c0_73 = arith.constant 0 : index
    %c0_74 = arith.constant 0 : index
    %100 = vector.load %arg14[%c0_72, %c0_73, %c0_74] : memref<1x4x256xf32, #tpu.memory_space<vmem>>, vector<1x4x256xf32>
    %101 = vector.shape_cast %100 : vector<1x4x256xf32> to vector<4x256xf32>
    %102 = vector.shape_cast %99 : vector<4x256xf32> to vector<1x4x256xf32>
    tpu.vector_store %arg14[%c0_72, %c0_73, %c0_74], %102 {strides = array<i32>} : memref<1x4x256xf32, #tpu.memory_space<vmem>>, vector<1x4x256xf32>,
    return
  }
  func.func @transform_0(%arg0: i32, %arg1: i32) -> (i32, i32, i32) {
    %c0_i32 = arith.constant 0 : i32
    %c0_i32_0 = arith.constant 0 : i32
    return %arg0, %c0_i32, %arg1 : i32, i32, i32
  }
  func.func @transform_1(%arg0: i32, %arg1: i32) -> (i32, i32, i32) {
    %c0_i32 = arith.constant 0 : i32
    %c0_i32_0 = arith.constant 0 : i32
    return %arg0, %c0_i32, %arg1 : i32, i32, i32
  }
  func.func @transform_2(%arg0: i32, %arg1: i32) -> (i32, i32) {
    %c0_i32 = arith.constant 0 : i32
    %c0_i32_0 = arith.constant 0 : i32
    %c0_i32_1 = arith.constant 0 : i32
    return %c0_i32, %c0_i32_0 : i32, i32
  }
  func.func @transform_3(%arg0: i32, %arg1: i32) -> (i32, i32) {
    %c0_i32 = arith.constant 0 : i32
    %c0_i32_0 = arith.constant 0 : i32
    %c0_i32_1 = arith.constant 0 : i32
    return %c0_i32, %c0_i32_0 : i32, i32
  }
  func.func @transform_4(%arg0: i32, %arg1: i32) -> (i32, i32, i32) {
    %c0_i32 = arith.constant 0 : i32
    %c0_i32_0 = arith.constant 0 : i32
    %c0_i32_1 = arith.constant 0 : i32
    %c0_i32_2 = arith.constant 0 : i32
    return %c0_i32, %c0_i32_0, %c0_i32_1 : i32, i32, i32
  }
  func.func @transform_5(%arg0: i32, %arg1: i32) -> (i32, i32, i32) {
    %c0_i32 = arith.constant 0 : i32
    %c0_i32_0 = arith.constant 0 : i32
    %c0_i32_1 = arith.constant 0 : i32
    %c0_i32_2 = arith.constant 0 : i32
    return %c0_i32, %c0_i32_0, %c0_i32_1 : i32, i32, i32
  }
  func.func @transform_6(%arg0: i32, %arg1: i32) -> (i32, i32, i32) {
    %c0_i32 = arith.constant 0 : i32
    %c0_i32_0 = arith.constant 0 : i32
    %c0_i32_1 = arith.constant 0 : i32
    %c0_i32_2 = arith.constant 0 : i32
    return %c0_i32, %c0_i32_0, %c0_i32_1 : i32, i32, i32
  }
  func.func @transform_7(%arg0: i32, %arg1: i32) -> (i32, i32, i32) {
    %c0_i32 = arith.constant 0 : i32
    %c0_i32_0 = arith.constant 0 : i32
    %c0_i32_1 = arith.constant 0 : i32
    %c0_i32_2 = arith.constant 0 : i32
    return %c0_i32, %c0_i32_0, %c0_i32_1 : i32, i32, i32
  }
  func.func @transform_8(%arg0: i32, %arg1: i32) -> (i32, i32, i32) {
    %c0_i32 = arith.constant 0 : i32
    %c0_i32_0 = arith.constant 0 : i32
    %c0_i32_1 = arith.constant 0 : i32
    %c0_i32_2 = arith.constant 0 : i32
    return %c0_i32, %c0_i32_0, %c0_i32_1 : i32, i32, i32
  }
  func.func @transform_9(%arg0: i32, %arg1: i32) -> (i32, i32, i32) {
    %c0_i32 = arith.constant 0 : i32
    %c0_i32_0 = arith.constant 0 : i32
    %c0_i32_1 = arith.constant 0 : i32
    %c0_i32_2 = arith.constant 0 : i32
    return %c0_i32, %c0_i32_0, %c0_i32_1 : i32, i32, i32
  }
  func.func @transform_10(%arg0: i32, %arg1: i32) -> (i32, i32, i32) {
    %c0_i32 = arith.constant 0 : i32
    %c0_i32_0 = arith.constant 0 : i32
    %c0_i32_1 = arith.constant 0 : i32
    %c0_i32_2 = arith.constant 0 : i32
    return %c0_i32, %c0_i32_0, %c0_i32_1 : i32, i32, i32
  }
  func.func @transform_11(%arg0: i32, %arg1: i32) -> (i32, i32, i32) {
    %c0_i32 = arith.constant 0 : i32
    %c0_i32_0 = arith.constant 0 : i32
    %c0_i32_1 = arith.constant 0 : i32
    %c0_i32_2 = arith.constant 0 : i32
    return %c0_i32, %c0_i32_0, %c0_i32_1 : i32, i32, i32
  }
  func.func @transform_12(%arg0: i32, %arg1: i32) -> (i32, i32, i32) {
    %c0_i32 = arith.constant 0 : i32
    %c0_i32_0 = arith.constant 0 : i32
    return %arg0, %c0_i32, %arg1 : i32, i32, i32
  }
}

</mosaic_0001>

<llo_original>
// kernel: tpu_custom_call.1
$region0: #{tpu_custom_call.1}
  #allocation0 [shape = 'u32[]', space=smem, size = 0x4, offset = 0x4, fixed_abs, tag = 'smem constant byte address 0x4 - core index']
  #allocation1 [shape = 'u32[144,128]{1,0:T(1,128)}', space=vmem, size = 0x12000, scoped, tag = 'internal scratch']
  %s0 = inlined_call_operand.vmem [shape: f32[2,4,256], index: 0, kind: input, shape index: {}]
  %s1 = inlined_call_operand.vmem [shape: f32[2,4,256], index: 1, kind: input, shape index: {}]
  %s2 = inlined_call_operand.vmem [shape: f32[192,4], index: 2, kind: input, shape index: {}]
  %s3 = inlined_call_operand.vmem [shape: f32[192,1], index: 3, kind: input, shape index: {}]
  %s4 = inlined_call_operand.vmem [shape: f32[2,32,2], index: 4, kind: input, shape index: {}]
  %s5 = inlined_call_operand.vmem [shape: f32[2,2,32], index: 5, kind: input, shape index: {}]
  %s6 = inlined_call_operand.vmem [shape: f32[2,2,1], index: 6, kind: input, shape index: {}]
  %s7 = inlined_call_operand.vmem [shape: f32[2,64,2], index: 7, kind: input, shape index: {}]
  %s8 = inlined_call_operand.vmem [shape: f32[2,2,32], index: 8, kind: input, shape index: {}]
  %s9 = inlined_call_operand.vmem [shape: f32[2,2,1], index: 9, kind: input, shape index: {}]
  %s10 = inlined_call_operand.vmem [shape: f32[2,2,32], index: 10, kind: input, shape index: {}]
  %s11 = inlined_call_operand.vmem [shape: f32[2,2,1], index: 11, kind: input, shape index: {}]
  %s12 = inlined_call_operand.hbm [shape: f32[2,4,256], index: 12, kind: output, shape index: {}]
  %s13 = sld [smem:[#allocation0]]
  $region81: #{tpu_custom_call.1} parent=0
    _
  %s15 = ssub.s32 1, %s13
  %s16 = scalar_select 0, %s15, %s13
  $region1: #{tpu_custom_call.1} parent=0
    #allocation2 [shape = 'u8[8192]{0}', space=vmem, size = 0x2000, scoped, tag = 'output window, operand 0']
    #allocation3 [shape = 's32[2]{0}', space=sflag, size = 0x8, scoped, tag = 'scoped memory for tpu_custom_call.1']
    %17 = vsyncpa [#allocation3], 0
    %s18 = scalar_lea.sflag [#allocation3], 1
    %19 = vsyncpa %s18, 0
    loop: start=0, step=1, limit=4
    $region2: #{tpu_custom_call.1} parent=1 // loop_pre_header
      _
    $region3: #{tpu_custom_call.1} parent=1 // loop_header
      %s21 = sphi 0, %s25
      %p22 = scmp.ge.s32.totalorder %s21, 4
      %s28 = sphi 0, %s40
      %s29 = sphi 0, %s36
      %s30 = sphi 0, %s28
      %s31 = sphi 0, %s29
      %s32 = sphi 0, %s30
      %s33 = sphi 0, %s31
      %s45 = sphi 0, %s47
      %s48 = sphi 0, %s45
      %s49 = sphi 0, %s48
      %s65 = sphi 0, %s49
      %s73 = sphi 0, %s75
      %s76 = sphi 0, %s73
      %s77 = sphi 0, %s76
      %s93 = sphi 0, %s77
      %s97 = sphi 0, %s97
      %s99 = sphi 0, %s97
      %s100 = sphi 0, %s99
      %s114 = sphi 0, %s100
      %s118 = sphi 0, %s118
      %s120 = sphi 0, %s118
      %s121 = sphi 0, %s120
      %s135 = sphi 0, %s121
      %s139 = sphi 0, %s139
      %s141 = sphi 0, %s139
      %s142 = sphi 0, %s141
      %s156 = sphi 0, %s142
      %s160 = sphi 0, %s160
      %s162 = sphi 0, %s160
      %s163 = sphi 0, %s162
      %s177 = sphi 0, %s163
      %s181 = sphi 0, %s181
      %s183 = sphi 0, %s181
      %s184 = sphi 0, %s183
      %s198 = sphi 0, %s184
      %s202 = sphi 0, %s202
      %s204 = sphi 0, %s202
      %s205 = sphi 0, %s204
      %s219 = sphi 0, %s205
      %s223 = sphi 0, %s223
      %s225 = sphi 0, %s223
      %s226 = sphi 0, %s225
      %s240 = sphi 0, %s226
      %s244 = sphi 0, %s244
      %s246 = sphi 0, %s244
      %s247 = sphi 0, %s246
      %s261 = sphi 0, %s247
      %s265 = sphi 0, %s265
      %s267 = sphi 0, %s265
      %s268 = sphi 0, %s267
      %s282 = sphi 0, %s268
      %s286 = sphi 0, %s286
      %s288 = sphi 0, %s286
      %s289 = sphi 0, %s288
      %s303 = sphi 0, %s289
      %s311 = sphi 0, %s313
      %s314 = sphi 0, %s311
      %s315 = sphi 0, %s314
      %s331 = sphi 0, %s315
    $region4: #{tpu_custom_call.1} parent=1 // loop_header_branch
      %24 = sbr.rel (%p22) target = $region8
    $region5: #{tpu_custom_call.1} parent=1 // loop_body
      %s26 = ssub.s32 %s21, 1
      %s27 = ssub.s32 %s21, 2
      %s34 = sadd.s32 1, %s29
      %p35 = scmp.ge.s32.totalorder %s34, 1
      %s36 = scalar_select %p35, 0, %s34
      %s37 = sadd.s32 1, %s28
      %s38 = scalar_select %p35, %s37, %s28
      %p39 = scmp.ge.s32.totalorder %s38, 2
      %s40 = scalar_select %p39, 0, %s38
      %s41 = ssub.s32 %s28, %s40
      %s42 = ssub.s32 %s29, %s36
      %s43 = sor.u32 %s41, %s42
      %p44 = scmp.eq.s32.totalorder %s43, 0
      %s46 = sadd.s32 %s45, 1
      %s47 = scalar_select %p44, %s45, %s46
      %p50 = pneg %p44
      %p51 = scmp.eq.s32.totalorder %s21, 1
      %p52 = por %p50, %p51
      %p53 = scmp.ne.s32.totalorder %s45, %s48
      %p54 = scmp.eq.s32.totalorder %s21, 0
      %p55 = por %p53, %p54
      %p56 = scmp.ne.s32.totalorder %s45, %s48
      %p57 = scmp.eq.s32.totalorder %s26, 1
      %p58 = por %p56, %p57
      %p59 = scmp.ne.s32.totalorder %s48, %s49
      %p60 = scmp.eq.s32.totalorder %s26, 0
      %p61 = por %p59, %p60
      %p62 = scmp.ne.s32.totalorder %s48, %s49
      %p63 = scmp.eq.s32.totalorder %s27, 1
      %p64 = por %p62, %p63
      %p66 = scmp.ne.s32.totalorder %s49, %s65
      %p67 = scmp.eq.s32.totalorder %s27, 0
      %p68 = por %p66, %p67
      %s69 = ssub.s32 %s28, %s40
      %s70 = ssub.s32 %s29, %s36
      %s71 = sor.u32 %s69, %s70
      %p72 = scmp.eq.s32.totalorder %s71, 0
      %s74 = sadd.s32 %s73, 1
      %s75 = scalar_select %p72, %s73, %s74
      %p78 = pneg %p72
      %p79 = scmp.eq.s32.totalorder %s21, 1
      %p80 = por %p78, %p79
      %p81 = scmp.ne.s32.totalorder %s73, %s76
      %p82 = scmp.eq.s32.totalorder %s21, 0
      %p83 = por %p81, %p82
      %p84 = scmp.ne.s32.totalorder %s73, %s76
      %p85 = scmp.eq.s32.totalorder %s26, 1
      %p86 = por %p84, %p85
      %p87 = scmp.ne.s32.totalorder %s76, %s77
      %p88 = scmp.eq.s32.totalorder %s26, 0
      %p89 = por %p87, %p88
      %p90 = scmp.ne.s32.totalorder %s76, %s77
      %p91 = scmp.eq.s32.totalorder %s27, 1
      %p92 = por %p90, %p91
      %p94 = scmp.ne.s32.totalorder %s77, %s93
      %p95 = scmp.eq.s32.totalorder %s27, 0
      %p96 = por %p94, %p95
      %s98 = sadd.s32 %s97, 1
      %p101 = scmp.eq.s32.totalorder %s21, 1
      %p102 = scmp.ne.s32.totalorder %s97, %s99
      %p103 = scmp.eq.s32.totalorder %s21, 0
      %p104 = por %p102, %p103
      %p105 = scmp.ne.s32.totalorder %s97, %s99
      %p106 = scmp.eq.s32.totalorder %s26, 1
      %p107 = por %p105, %p106
      %p108 = scmp.ne.s32.totalorder %s99, %s100
      %p109 = scmp.eq.s32.totalorder %s26, 0
      %p110 = por %p108, %p109
      %p111 = scmp.ne.s32.totalorder %s99, %s100
      %p112 = scmp.eq.s32.totalorder %s27, 1
      %p113 = por %p111, %p112
      %p115 = scmp.ne.s32.totalorder %s100, %s114
      %p116 = scmp.eq.s32.totalorder %s27, 0
      %p117 = por %p115, %p116
      %s119 = sadd.s32 %s118, 1
      %p122 = scmp.eq.s32.totalorder %s21, 1
      %p123 = scmp.ne.s32.totalorder %s118, %s120
      %p124 = scmp.eq.s32.totalorder %s21, 0
      %p125 = por %p123, %p124
      %p126 = scmp.ne.s32.totalorder %s118, %s120
      %p127 = scmp.eq.s32.totalorder %s26, 1
      %p128 = por %p126, %p127
      %p129 = scmp.ne.s32.totalorder %s120, %s121
      %p130 = scmp.eq.s32.totalorder %s26, 0
      %p131 = por %p129, %p130
      %p132 = scmp.ne.s32.totalorder %s120, %s121
      %p133 = scmp.eq.s32.totalorder %s27, 1
      %p134 = por %p132, %p133
      %p136 = scmp.ne.s32.totalorder %s121, %s135
      %p137 = scmp.eq.s32.totalorder %s27, 0
      %p138 = por %p136, %p137
      %s140 = sadd.s32 %s139, 1
      %p143 = scmp.eq.s32.totalorder %s21, 1
      %p144 = scmp.ne.s32.totalorder %s139, %s141
      %p145 = scmp.eq.s32.totalorder %s21, 0
      %p146 = por %p144, %p145
      %p147 = scmp.ne.s32.totalorder %s139, %s141
      %p148 = scmp.eq.s32.totalorder %s26, 1
      %p149 = por %p147, %p148
      %p150 = scmp.ne.s32.totalorder %s141, %s142
      %p151 = scmp.eq.s32.totalorder %s26, 0
      %p152 = por %p150, %p151
      %p153 = scmp.ne.s32.totalorder %s141, %s142
      %p154 = scmp.eq.s32.totalorder %s27, 1
      %p155 = por %p153, %p154
      %p157 = scmp.ne.s32.totalorder %s142, %s156
      %p158 = scmp.eq.s32.totalorder %s27, 0
      %p159 = por %p157, %p158
      %s161 = sadd.s32 %s160, 1
      %p164 = scmp.eq.s32.totalorder %s21, 1
      %p165 = scmp.ne.s32.totalorder %s160, %s162
      %p166 = scmp.eq.s32.totalorder %s21, 0
      %p167 = por %p165, %p166
      %p168 = scmp.ne.s32.totalorder %s160, %s162
      %p169 = scmp.eq.s32.totalorder %s26, 1
      %p170 = por %p168, %p169
      %p171 = scmp.ne.s32.totalorder %s162, %s163
      %p172 = scmp.eq.s32.totalorder %s26, 0
      %p173 = por %p171, %p172
      %p174 = scmp.ne.s32.totalorder %s162, %s163
      %p175 = scmp.eq.s32.totalorder %s27, 1
      %p176 = por %p174, %p175
      %p178 = scmp.ne.s32.totalorder %s163, %s177
      %p179 = scmp.eq.s32.totalorder %s27, 0
      %p180 = por %p178, %p179
      %s182 = sadd.s32 %s181, 1
      %p185 = scmp.eq.s32.totalorder %s21, 1
      %p186 = scmp.ne.s32.totalorder %s181, %s183
      %p187 = scmp.eq.s32.totalorder %s21, 0
      %p188 = por %p186, %p187
      %p189 = scmp.ne.s32.totalorder %s181, %s183
      %p190 = scmp.eq.s32.totalorder %s26, 1
      %p191 = por %p189, %p190
      %p192 = scmp.ne.s32.totalorder %s183, %s184
      %p193 = scmp.eq.s32.totalorder %s26, 0
      %p194 = por %p192, %p193
      %p195 = scmp.ne.s32.totalorder %s183, %s184
      %p196 = scmp.eq.s32.totalorder %s27, 1
      %p197 = por %p195, %p196
      %p199 = scmp.ne.s32.totalorder %s184, %s198
      %p200 = scmp.eq.s32.totalorder %s27, 0
      %p201 = por %p199, %p200
      %s203 = sadd.s32 %s202, 1
      %p206 = scmp.eq.s32.totalorder %s21, 1
      %p207 = scmp.ne.s32.totalorder %s202, %s204
      %p208 = scmp.eq.s32.totalorder %s21, 0
      %p209 = por %p207, %p208
      %p210 = scmp.ne.s32.totalorder %s202, %s204
      %p211 = scmp.eq.s32.totalorder %s26, 1
      %p212 = por %p210, %p211
      %p213 = scmp.ne.s32.totalorder %s204, %s205
      %p214 = scmp.eq.s32.totalorder %s26, 0
      %p215 = por %p213, %p214
      %p216 = scmp.ne.s32.totalorder %s204, %s205
      %p217 = scmp.eq.s32.totalorder %s27, 1
      %p218 = por %p216, %p217
      %p220 = scmp.ne.s32.totalorder %s205, %s219
      %p221 = scmp.eq.s32.totalorder %s27, 0
      %p222 = por %p220, %p221
      %s224 = sadd.s32 %s223, 1
      %p227 = scmp.eq.s32.totalorder %s21, 1
      %p228 = scmp.ne.s32.totalorder %s223, %s225
      %p229 = scmp.eq.s32.totalorder %s21, 0
      %p230 = por %p228, %p229
      %p231 = scmp.ne.s32.totalorder %s223, %s225
      %p232 = scmp.eq.s32.totalorder %s26, 1
      %p233 = por %p231, %p232
      %p234 = scmp.ne.s32.totalorder %s225, %s226
      %p235 = scmp.eq.s32.totalorder %s26, 0
      %p236 = por %p234, %p235
      %p237 = scmp.ne.s32.totalorder %s225, %s226
      %p238 = scmp.eq.s32.totalorder %s27, 1
      %p239 = por %p237, %p238
      %p241 = scmp.ne.s32.totalorder %s226, %s240
      %p242 = scmp.eq.s32.totalorder %s27, 0
      %p243 = por %p241, %p242
      %s245 = sadd.s32 %s244, 1
      %p248 = scmp.eq.s32.totalorder %s21, 1
      %p249 = scmp.ne.s32.totalorder %s244, %s246
      %p250 = scmp.eq.s32.totalorder %s21, 0
      %p251 = por %p249, %p250
      %p252 = scmp.ne.s32.totalorder %s244, %s246
      %p253 = scmp.eq.s32.totalorder %s26, 1
      %p254 = por %p252, %p253
      %p255 = scmp.ne.s32.totalorder %s246, %s247
      %p256 = scmp.eq.s32.totalorder %s26, 0
      %p257 = por %p255, %p256
      %p258 = scmp.ne.s32.totalorder %s246, %s247
      %p259 = scmp.eq.s32.totalorder %s27, 1
      %p260 = por %p258, %p259
      %p262 = scmp.ne.s32.totalorder %s247, %s261
      %p263 = scmp.eq.s32.totalorder %s27, 0
      %p264 = por %p262, %p263
      %s266 = sadd.s32 %s265, 1
      %p269 = scmp.eq.s32.totalorder %s21, 1
      %p270 = scmp.ne.s32.totalorder %s265, %s267
      %p271 = scmp.eq.s32.totalorder %s21, 0
      %p272 = por %p270, %p271
      %p273 = scmp.ne.s32.totalorder %s265, %s267
      %p274 = scmp.eq.s32.totalorder %s26, 1
      %p275 = por %p273, %p274
      %p276 = scmp.ne.s32.totalorder %s267, %s268
      %p277 = scmp.eq.s32.totalorder %s26, 0
      %p278 = por %p276, %p277
      %p279 = scmp.ne.s32.totalorder %s267, %s268
      %p280 = scmp.eq.s32.totalorder %s27, 1
      %p281 = por %p279, %p280
      %p283 = scmp.ne.s32.totalorder %s268, %s282
      %p284 = scmp.eq.s32.totalorder %s27, 0
      %p285 = por %p283, %p284
      %s287 = sadd.s32 %s286, 1
      %p290 = scmp.eq.s32.totalorder %s21, 1
      %p291 = scmp.ne.s32.totalorder %s286, %s288
      %p292 = scmp.eq.s32.totalorder %s21, 0
      %p293 = por %p291, %p292
      %p294 = scmp.ne.s32.totalorder %s286, %s288
      %p295 = scmp.eq.s32.totalorder %s26, 1
      %p296 = por %p294, %p295
      %p297 = scmp.ne.s32.totalorder %s288, %s289
      %p298 = scmp.eq.s32.totalorder %s26, 0
      %p299 = por %p297, %p298
      %p300 = scmp.ne.s32.totalorder %s288, %s289
      %p301 = scmp.eq.s32.totalorder %s27, 1
      %p302 = por %p300, %p301
      %p304 = scmp.ne.s32.totalorder %s289, %s303
      %p305 = scmp.eq.s32.totalorder %s27, 0
      %p306 = por %p304, %p305
      %s307 = ssub.s32 %s28, %s40
      %s308 = ssub.s32 %s29, %s36
      %s309 = sor.u32 %s307, %s308
      %p310 = scmp.eq.s32.totalorder %s309, 0
      %s312 = sadd.s32 %s311, 1
      %s313 = scalar_select %p310, %s311, %s312
      %p316 = pneg %p310
      %p317 = scmp.eq.s32.totalorder %s21, 1
      %p318 = por %p316, %p317
      %p319 = scmp.ne.s32.totalorder %s311, %s314
      %p320 = scmp.eq.s32.totalorder %s21, 0
      %p321 = por %p319, %p320
      %p322 = scmp.ne.s32.totalorder %s311, %s314
      %p323 = scmp.eq.s32.totalorder %s26, 1
      %p324 = por %p322, %p323
      %p325 = scmp.ne.s32.totalorder %s314, %s315
      %p326 = scmp.eq.s32.totalorder %s26, 0
      %p327 = por %p325, %p326
      %p328 = scmp.ne.s32.totalorder %s314, %s315
      %p329 = scmp.eq.s32.totalorder %s27, 1
      %p330 = por %p328, %p329
      %p332 = scmp.ne.s32.totalorder %s315, %s331
      %p333 = scmp.eq.s32.totalorder %s27, 0
      %p334 = por %p332, %p333
      %p335 = scmp.le.s32.totalorder 1, %s21
      %p336 = scmp.lt.s32.totalorder %s21, 3
      %p337 = pnand %p335, %p336
      %p338 = pneg %p337
      // Predicated region
      $region9: #{tpu_custom_call.1} parent=5 // pred_check
        _
      $region10: #{tpu_custom_call.1} parent=5 // pred_check_branch
        %340 = sbr.rel (%p337) target = $region12
      $region11: #{tpu_custom_call.1} parent=5 // pred_region
        %s341 = ssub.s32 %s21, 1
        // Predicated region
        $region13: #{tpu_custom_call.1} parent=11 // pred_check
          %p342 = pneg %p110
        $region14: #{tpu_custom_call.1} parent=11 // pred_check_branch
          %344 = sbr.rel (%p342) target = $region16
        $region15: #{tpu_custom_call.1} parent=11 // pred_region
          _
        $region16: #{tpu_custom_call.1} parent=11 // pred_fallthru
          _
        // Predicated region
        $region17: #{tpu_custom_call.1} parent=11 // pred_check
          %p345 = pneg %p131
        $region18: #{tpu_custom_call.1} parent=11 // pred_check_branch
          %347 = sbr.rel (%p345) target = $region20
        $region19: #{tpu_custom_call.1} parent=11 // pred_region
          _
        $region20: #{tpu_custom_call.1} parent=11 // pred_fallthru
          _
        // Predicated region
        $region21: #{tpu_custom_call.1} parent=11 // pred_check
          %p348 = pneg %p152
        $region22: #{tpu_custom_call.1} parent=11 // pred_check_branch
          %350 = sbr.rel (%p348) target = $region24
        $region23: #{tpu_custom_call.1} parent=11 // pred_region
          _
        $region24: #{tpu_custom_call.1} parent=11 // pred_fallthru
          _
        // Predicated region
        $region25: #{tpu_custom_call.1} parent=11 // pred_check
          %p351 = pneg %p173
        $region26: #{tpu_custom_call.1} parent=11 // pred_check_branch
          %353 = sbr.rel (%p351) target = $region28
        $region27: #{tpu_custom_call.1} parent=11 // pred_region
          _
        $region28: #{tpu_custom_call.1} parent=11 // pred_fallthru
          _
        // Predicated region
        $region29: #{tpu_custom_call.1} parent=11 // pred_check
          %p354 = pneg %p194
        $region30: #{tpu_custom_call.1} parent=11 // pred_check_branch
          %356 = sbr.rel (%p354) target = $region32
        $region31: #{tpu_custom_call.1} parent=11 // pred_region
          _
        $region32: #{tpu_custom_call.1} parent=11 // pred_fallthru
          _
        // Predicated region
        $region33: #{tpu_custom_call.1} parent=11 // pred_check
          %p357 = pneg %p215
        $region34: #{tpu_custom_call.1} parent=11 // pred_check_branch
          %359 = sbr.rel (%p357) target = $region36
        $region35: #{tpu_custom_call.1} parent=11 // pred_region
          _
        $region36: #{tpu_custom_call.1} parent=11 // pred_fallthru
          _
        // Predicated region
        $region37: #{tpu_custom_call.1} parent=11 // pred_check
          %p360 = pneg %p236
        $region38: #{tpu_custom_call.1} parent=11 // pred_check_branch
          %362 = sbr.rel (%p360) target = $region40
        $region39: #{tpu_custom_call.1} parent=11 // pred_region
          _
        $region40: #{tpu_custom_call.1} parent=11 // pred_fallthru
          _
        // Predicated region
        $region41: #{tpu_custom_call.1} parent=11 // pred_check
          %p363 = pneg %p257
        $region42: #{tpu_custom_call.1} parent=11 // pred_check_branch
          %365 = sbr.rel (%p363) target = $region44
        $region43: #{tpu_custom_call.1} parent=11 // pred_region
          _
        $region44: #{tpu_custom_call.1} parent=11 // pred_fallthru
          _
        // Predicated region
        $region45: #{tpu_custom_call.1} parent=11 // pred_check
          %p366 = pneg %p278
        $region46: #{tpu_custom_call.1} parent=11 // pred_check_branch
          %368 = sbr.rel (%p366) target = $region48
        $region47: #{tpu_custom_call.1} parent=11 // pred_region
          _
        $region48: #{tpu_custom_call.1} parent=11 // pred_fallthru
          _
        // Predicated region
        $region49: #{tpu_custom_call.1} parent=11 // pred_check
          %p369 = pneg %p299
        $region50: #{tpu_custom_call.1} parent=11 // pred_check_branch
          %371 = sbr.rel (%p369) target = $region52
        $region51: #{tpu_custom_call.1} parent=11 // pred_region
          _
        $region52: #{tpu_custom_call.1} parent=11 // pred_fallthru
          _
      $region12: #{tpu_custom_call.1} parent=5 // pred_fallthru
        _
      %p372 = scmp.lt.s32.totalorder %s21, 2
      // Predicated region
      $region53: #{tpu_custom_call.1} parent=5 // pred_check
        %p373 = pneg %p372
      $region54: #{tpu_custom_call.1} parent=5 // pred_check_branch
        %375 = sbr.rel (%p373) target = $region56
      $region55: #{tpu_custom_call.1} parent=5 // pred_region
        // Predicated region
        $region57: #{tpu_custom_call.1} parent=55 // pred_check
          %p376 = pneg %p55
        $region58: #{tpu_custom_call.1} parent=55 // pred_check_branch
          %378 = sbr.rel (%p376) target = $region60
        $region59: #{tpu_custom_call.1} parent=55 // pred_region
          %s379 = smul.u32 2, %s29
          %p380 = scmp.lt.s32.totalorder %s28, 1
          %s381 = scalar_select %p380, %s28, 1
          %p382 = scmp.lt.s32.totalorder %s379, 1
          %s383 = scalar_select %p382, %s379, 1
          %s384 = smul.addr %s381, 2
          %s385 = sadd.s32 %s383, %s384
          %s386 = smul.addr %s385, 4
          %s387 = scalar_lea.vmem %s0, %s386
          %s388 = smul.u32 2, %s29
        $region60: #{tpu_custom_call.1} parent=55 // pred_fallthru
          _
        // Predicated region
        $region61: #{tpu_custom_call.1} parent=55 // pred_check
          %p389 = pneg %p83
        $region62: #{tpu_custom_call.1} parent=55 // pred_check_branch
          %391 = sbr.rel (%p389) target = $region64
        $region63: #{tpu_custom_call.1} parent=55 // pred_region
          %s392 = smul.u32 2, %s29
          %p393 = scmp.lt.s32.totalorder %s28, 1
          %s394 = scalar_select %p393, %s28, 1
          %p395 = scmp.lt.s32.totalorder %s392, 1
          %s396 = scalar_select %p395, %s392, 1
          %s397 = smul.addr %s394, 2
          %s398 = sadd.s32 %s396, %s397
          %s399 = smul.addr %s398, 4
          %s400 = scalar_lea.vmem %s1, %s399
          %s401 = smul.u32 2, %s29
        $region64: #{tpu_custom_call.1} parent=55 // pred_fallthru
          _
      $region56: #{tpu_custom_call.1} parent=5 // pred_fallthru
        _
      %p402 = scmp.le.s32.totalorder 1, %s21
      %p403 = scmp.lt.s32.totalorder %s21, 3
      %p404 = pnand %p402, %p403
      %p405 = pneg %p404
      // Predicated region
      $region65: #{tpu_custom_call.1} parent=5 // pred_check
        _
      $region66: #{tpu_custom_call.1} parent=5 // pred_check_branch
        %407 = sbr.rel (%p404) target = $region68
      $region67: #{tpu_custom_call.1} parent=5 // pred_region
        %s408 = ssub.s32 %s21, 1
        %s409 = smul.u32 2, %s31
        %p410 = scmp.lt.s32.totalorder %s30, 1
        %s411 = scalar_select %p410, %s30, 1
        %p412 = scmp.lt.s32.totalorder %s409, 1
        %s413 = scalar_select %p412, %s409, 1
        %s414 = smul.addr %s411, 2
        %s415 = sadd.s32 %s413, %s414
        %s416 = smul.addr %s415, 4
        %s417 = scalar_lea.vmem %s0, %s416
        %p418 = pneg %p61
        %p419 = pneg %p58
        %s420 = smul.u32 2, %s31
        %p421 = scmp.lt.s32.totalorder %s30, 1
        %s422 = scalar_select %p421, %s30, 1
        %p423 = scmp.lt.s32.totalorder %s420, 1
        %s424 = scalar_select %p423, %s420, 1
        %s425 = smul.addr %s422, 2
        %s426 = sadd.s32 %s424, %s425
        %s427 = smul.addr %s426, 4
        %s428 = scalar_lea.vmem %s1, %s427
        %p429 = pneg %p89
        %p430 = pneg %p86
        %p431 = pneg %p110
        %p432 = pneg %p107
        %p433 = pneg %p131
        %p434 = pneg %p128
        %p435 = pneg %p152
        %p436 = pneg %p149
        %p437 = pneg %p173
        %p438 = pneg %p170
        %p439 = pneg %p194
        %p440 = pneg %p191
        %p441 = pneg %p215
        %p442 = pneg %p212
        %p443 = pneg %p236
        %p444 = pneg %p233
        %p445 = pneg %p257
        %p446 = pneg %p254
        %p447 = pneg %p278
        %p448 = pneg %p275
        %p449 = pneg %p299
        %p450 = pneg %p296
        %p451 = pneg %p327
        %p452 = pneg %p324
        %s453 = sand.u32 %s314, 1
        %s454 = scalar_lea.sflag [#allocation3], %s453
        %s455 = sand.u32 %s314, 1
        %s456 = smul.addr %s455, 8
        %s457 = scalar_lea.vmem [#allocation2], %s456
        %s458 = smul.u32 2, %s31
        %p459 = scmp.lt.s32.totalorder %s30, 1
        %s460 = scalar_select %p459, %s30, 1
        %p461 = scmp.lt.s32.totalorder %s458, 1
        %s462 = scalar_select %p461, %s458, 1
        %s463 = smul.addr %s460, 2
        %s464 = sadd.s32 %s462, %s463
        %s465 = smul.addr %s464, 4
        %s466 = scalar_lea.vmem %s0, %s465
        %s467 = smul.u32 2, %s31
        %s468 = smul.u32 2, %s31
        %p469 = scmp.lt.s32.totalorder %s30, 1
        %s470 = scalar_select %p469, %s30, 1
        %p471 = scmp.lt.s32.totalorder %s468, 1
        %s472 = scalar_select %p471, %s468, 1
        %s473 = smul.addr %s470, 2
        %s474 = sadd.s32 %s472, %s473
        %s475 = smul.addr %s474, 4
        %s476 = scalar_lea.vmem %s1, %s475
        %s477 = smul.u32 2, %s31
        %s478 = smul.u32 2, %s31
        %v479 = vld [vmem:[%s466] sm:$0xff]
        %v480 = vld [vmem:[%s476] sm:$0xff]
        %v481 = vld [vmem:[%s2] sm:$0xff]
        %v482 = vld [vmem:[%s2 + $0x8] sm:$0xff]
        %v483 = vld [vmem:[%s2 + $0x10] sm:$0xff]
        %v484 = vld [vmem:[%s2 + $0x18] sm:$0xff]
        %v485 = vld [vmem:[%s2 + $0x20] sm:$0xff]
        %v486 = vld [vmem:[%s2 + $0x28] sm:$0xff]
        %v487 = vld [vmem:[%s2 + $0x30] sm:$0xff]
        %v488 = vld [vmem:[%s2 + $0x38] sm:$0xff]
        %v489 = vld [vmem:[%s2 + $0x40] sm:$0xff]
        %v490 = vld [vmem:[%s2 + $0x48] sm:$0xff]
        %v491 = vld [vmem:[%s2 + $0x50] sm:$0xff]
        %v492 = vld [vmem:[%s2 + $0x58] sm:$0xff]
        %v493 = vld [vmem:[%s2 + $0x60] sm:$0xff]
        %v494 = vld [vmem:[%s2 + $0x68] sm:$0xff]
        %v495 = vld [vmem:[%s2 + $0x70] sm:$0xff]
        %v496 = vld [vmem:[%s2 + $0x78] sm:$0xff]
        %v497 = vld [vmem:[%s2 + $0x80] sm:$0xff]
        %v498 = vld [vmem:[%s2 + $0x88] sm:$0xff]
        %v499 = vld [vmem:[%s2 + $0x90] sm:$0xff]
        %v500 = vld [vmem:[%s2 + $0x98] sm:$0xff]
        %v501 = vld [vmem:[%s2 + $0xa0] sm:$0xff]
        %v502 = vld [vmem:[%s2 + $0xa8] sm:$0xff]
        %v503 = vld [vmem:[%s2 + $0xb0] sm:$0xff]
        %v504 = vld [vmem:[%s2 + $0xb8] sm:$0xff]
        %v505 = vld [vmem:[%s3] sm:$0xff]
        %v506 = vld [vmem:[%s3 + $0x8] sm:$0xff]
        %v507 = vld [vmem:[%s3 + $0x10] sm:$0xff]
        %v508 = vld [vmem:[%s3 + $0x18] sm:$0xff]
        %v509 = vld [vmem:[%s3 + $0x20] sm:$0xff]
        %v510 = vld [vmem:[%s3 + $0x28] sm:$0xff]
        %v511 = vld [vmem:[%s3 + $0x30] sm:$0xff]
        %v512 = vld [vmem:[%s3 + $0x38] sm:$0xff]
        %v513 = vld [vmem:[%s3 + $0x40] sm:$0xff]
        %v514 = vld [vmem:[%s3 + $0x48] sm:$0xff]
        %v515 = vld [vmem:[%s3 + $0x50] sm:$0xff]
        %v516 = vld [vmem:[%s3 + $0x58] sm:$0xff]
        %v517 = vld [vmem:[%s3 + $0x60] sm:$0xff]
        %v518 = vld [vmem:[%s3 + $0x68] sm:$0xff]
        %v519 = vld [vmem:[%s3 + $0x70] sm:$0xff]
        %v520 = vld [vmem:[%s3 + $0x78] sm:$0xff]
        %v521 = vld [vmem:[%s3 + $0x80] sm:$0xff]
        %v522 = vld [vmem:[%s3 + $0x88] sm:$0xff]
        %v523 = vld [vmem:[%s3 + $0x90] sm:$0xff]
        %v524 = vld [vmem:[%s3 + $0x98] sm:$0xff]
        %v525 = vld [vmem:[%s3 + $0xa0] sm:$0xff]
        %v526 = vld [vmem:[%s3 + $0xa8] sm:$0xff]
        %v527 = vld [vmem:[%s3 + $0xb0] sm:$0xff]
        %v528 = vld [vmem:[%s3 + $0xb8] sm:$0xff]
        %530 = vset.pattern.permute.xlu0 0
        %531 = vperm.xlu0 %530, %v505
        %v532 = vpop.permute.xlu0 %531
        %535 = vset.pattern.permute.xlu0 0
        %536 = vperm.xlu0 %535, %v506
        %v537 = vpop.permute.xlu0 %536
        %540 = vset.pattern.permute.xlu0 0
        %541 = vperm.xlu0 %540, %v507
        %v542 = vpop.permute.xlu0 %541
        %545 = vset.pattern.permute.xlu0 0
        %546 = vperm.xlu0 %545, %v508
        %v547 = vpop.permute.xlu0 %546
        %550 = vset.pattern.permute.xlu0 0
        %551 = vperm.xlu0 %550, %v509
        %v552 = vpop.permute.xlu0 %551
        %555 = vset.pattern.permute.xlu0 0
        %556 = vperm.xlu0 %555, %v510
        %v557 = vpop.permute.xlu0 %556
        %560 = vset.pattern.permute.xlu0 0
        %561 = vperm.xlu0 %560, %v511
        %v562 = vpop.permute.xlu0 %561
        %565 = vset.pattern.permute.xlu0 0
        %566 = vperm.xlu0 %565, %v512
        %v567 = vpop.permute.xlu0 %566
        %570 = vset.pattern.permute.xlu0 0
        %571 = vperm.xlu0 %570, %v513
        %v572 = vpop.permute.xlu0 %571
        %575 = vset.pattern.permute.xlu0 0
        %576 = vperm.xlu0 %575, %v514
        %v577 = vpop.permute.xlu0 %576
        %580 = vset.pattern.permute.xlu0 0
        %581 = vperm.xlu0 %580, %v515
        %v582 = vpop.permute.xlu0 %581
        %585 = vset.pattern.permute.xlu0 0
        %586 = vperm.xlu0 %585, %v516
        %v587 = vpop.permute.xlu0 %586
        %590 = vset.pattern.permute.xlu0 0
        %591 = vperm.xlu0 %590, %v517
        %v592 = vpop.permute.xlu0 %591
        %595 = vset.pattern.permute.xlu0 0
        %596 = vperm.xlu0 %595, %v518
        %v597 = vpop.permute.xlu0 %596
        %600 = vset.pattern.permute.xlu0 0
        %601 = vperm.xlu0 %600, %v519
        %v602 = vpop.permute.xlu0 %601
        %605 = vset.pattern.permute.xlu0 0
        %606 = vperm.xlu0 %605, %v520
        %v607 = vpop.permute.xlu0 %606
        %610 = vset.pattern.permute.xlu0 0
        %611 = vperm.xlu0 %610, %v521
        %v612 = vpop.permute.xlu0 %611
        %615 = vset.pattern.permute.xlu0 0
        %616 = vperm.xlu0 %615, %v522
        %v617 = vpop.permute.xlu0 %616
        %620 = vset.pattern.permute.xlu0 0
        %621 = vperm.xlu0 %620, %v523
        %v622 = vpop.permute.xlu0 %621
        %625 = vset.pattern.permute.xlu0 0
        %626 = vperm.xlu0 %625, %v524
        %v627 = vpop.permute.xlu0 %626
        %630 = vset.pattern.permute.xlu0 0
        %631 = vperm.xlu0 %630, %v525
        %v632 = vpop.permute.xlu0 %631
        %635 = vset.pattern.permute.xlu0 0
        %636 = vperm.xlu0 %635, %v526
        %v637 = vpop.permute.xlu0 %636
        %640 = vset.pattern.permute.xlu0 0
        %641 = vperm.xlu0 %640, %v527
        %v642 = vpop.permute.xlu0 %641
        %645 = vset.pattern.permute.xlu0 0
        %646 = vperm.xlu0 %645, %v528
        %v647 = vpop.permute.xlu0 %646
        %v650 = vcombine.high %v480, %v480
        %vm651 = vcmask 31744
        %v653 = vsel %vm651, %v481, 0
        %v656 = vsel %vm651, %v482, 0
        %v659 = vsel %vm651, %v483, 0
        %v662 = vsel %vm651, %v484, 0
        %v665 = vsel %vm651, %v485, 0
        %v668 = vsel %vm651, %v486, 0
        %v671 = vsel %vm651, %v487, 0
        %v674 = vsel %vm651, %v488, 0
        %v677 = vsel %vm651, %v489, 0
        %v680 = vsel %vm651, %v490, 0
        %v683 = vsel %vm651, %v491, 0
        %v686 = vsel %vm651, %v492, 0
        %v689 = vsel %vm651, %v493, 0
        %v692 = vsel %vm651, %v494, 0
        %v695 = vsel %vm651, %v495, 0
        %v698 = vsel %vm651, %v496, 0
        %v701 = vsel %vm651, %v497, 0
        %v704 = vsel %vm651, %v498, 0
        %v707 = vsel %vm651, %v499, 0
        %v710 = vsel %vm651, %v500, 0
        %v713 = vsel %vm651, %v501, 0
        %v716 = vsel %vm651, %v502, 0
        %v719 = vsel %vm651, %v503, 0
        %v722 = vsel %vm651, %v504, 0
        %vm724 = vcmask 1043456
        %v725 = vsel %vm724, %v480, 0
        %v727 = vsel %vm724, %v650, 0
        %729 = vmatprep.subr.mxu0 %v727
        %730 = vmatpush1.msra.mxu0 %v725
        %731 = vmatprep.subr.mxu0 0.0
        %732 = vmatpush1.msra.mxu0 0.0
        %733 = vmatprep.subr.mxu0 0.0
        %734 = vmatpush1.msra.mxu0 0.0
        %735 = vmatprep.subr.mxu0 0.0
        %736 = vmatpush1.msra.mxu0 0.0
        %737 = vmatprep.subr.mxu0 0.0
        %738 = vmatpush1.msra.mxu0 0.0
        %739 = vmatprep.subr.mxu0 0.0
        %740 = vmatpush1.msra.mxu0 0.0
        %741 = vmatprep.subr.mxu0 0.0
        %742 = vmatpush1.msra.mxu0 0.0
        %743 = vmatprep.subr.mxu0 0.0
        %744 = vmatpush1.msra.mxu0 0.0
        %745 = vmatprep.subr.mxu0 0.0
        %746 = vmatpush1.msra.mxu0 0.0
        %747 = vmatprep.subr.mxu0 0.0
        %748 = vmatpush1.msra.mxu0 0.0
        %749 = vmatprep.subr.mxu0 0.0
        %750 = vmatpush1.msra.mxu0 0.0
        %751 = vmatprep.subr.mxu0 0.0
        %752 = vmatpush1.msra.mxu0 0.0
        %753 = vmatprep.subr.mxu0 0.0
        %754 = vmatpush1.msra.mxu0 0.0
        %755 = vmatprep.subr.mxu0 0.0
        %756 = vmatpush1.msra.mxu0 0.0
        %757 = vmatprep.subr.mxu0 0.0
        %758 = vmatpush1.msra.mxu0 0.0
        %759 = vmatprep.subr.mxu0 0.0
        %760 = vmatpush1.msra.mxu0 0.0
        %761 = vmatprep.subr.mxu0 0.0
        %762 = vmatpush1.msra.mxu0 0.0
        %763 = vmatprep.subr.mxu0 0.0
        %764 = vmatpush1.msra.mxu0 0.0
        %765 = vmatprep.subr.mxu0 0.0
        %766 = vmatpush1.msra.mxu0 0.0
        %767 = vmatprep.subr.mxu0 0.0
        %768 = vmatpush1.msra.mxu0 0.0
        %769 = vmatprep.subr.mxu0 0.0
        %770 = vmatpush1.msra.mxu0 0.0
        %771 = vmatprep.subr.mxu0 0.0
        %772 = vmatpush1.msra.mxu0 0.0
        %773 = vmatprep.subr.mxu0 0.0
        %774 = vmatpush1.msra.mxu0 0.0
        %775 = vmatprep.subr.mxu0 0.0
        %776 = vmatpush1.msra.mxu0 0.0
        %777 = vmatprep.subr.mxu0 0.0
        %778 = vmatpush1.msra.mxu0 0.0
        %779 = vmatprep.subr.mxu0 0.0
        %780 = vmatpush1.msra.mxu0 0.0
        %781 = vmatprep.subr.mxu0 0.0
        %782 = vmatpush1.msra.mxu0 0.0
        %783 = vmatprep.subr.mxu0 0.0
        %784 = vmatpush1.msra.mxu0 0.0
        %785 = vmatprep.subr.mxu0 0.0
        %786 = vmatpush1.msra.mxu0 0.0
        %787 = vmatprep.subr.mxu0 0.0
        %788 = vmatpush1.msra.mxu0 0.0
        %789 = vmatprep.subr.mxu0 0.0
        %790 = vmatpush1.msra.mxu0 0.0
        %791 = vmatprep.subr.mxu0 0.0
        %792 = vmatpush1.msra.mxu0 0.0
        %793 = vmatprep.mubr.f32.mxu0 0.0
        %794 = vmatmul.mubr.f32.gmra.mrb[0].mxu0 %v653
        %v795 = vpop.f32.mrb[0].mxu0
        %v796 = vadd.f32 %v532, %v795
        %v797 = vpop.f32.mrb[0].mxu0
        %v798 = vadd.f32 %v532, %v797
        %799 = vmatprep.mubr.f32.mxu0 0.0
        %800 = vmatmul.mubr.f32.gmra.mrb[0].mxu0 %v656
        %v801 = vpop.f32.mrb[0].mxu0
        %v802 = vadd.f32 %v537, %v801
        %v803 = vpop.f32.mrb[0].mxu0
        %v804 = vadd.f32 %v537, %v803
        %805 = vmatprep.mubr.f32.mxu0 0.0
        %806 = vmatmul.mubr.f32.gmra.mrb[0].mxu0 %v659
        %v807 = vpop.f32.mrb[0].mxu0
        %v808 = vadd.f32 %v542, %v807
        %v809 = vpop.f32.mrb[0].mxu0
        %v810 = vadd.f32 %v542, %v809
        %811 = vmatprep.mubr.f32.mxu0 0.0
        %812 = vmatmul.mubr.f32.gmra.mrb[0].mxu0 %v662
        %v813 = vpop.f32.mrb[0].mxu0
        %v814 = vadd.f32 %v547, %v813
        %v815 = vpop.f32.mrb[0].mxu0
        %v816 = vadd.f32 %v547, %v815
        %817 = vmatprep.mubr.f32.mxu0 0.0
        %818 = vmatmul.mubr.f32.gmra.mrb[0].mxu0 %v665
        %v819 = vpop.f32.mrb[0].mxu0
        %v820 = vadd.f32 %v552, %v819
        %v821 = vpop.f32.mrb[0].mxu0
        %v822 = vadd.f32 %v552, %v821
        %823 = vmatprep.mubr.f32.mxu0 0.0
        %824 = vmatmul.mubr.f32.gmra.mrb[0].mxu0 %v668
        %v825 = vpop.f32.mrb[0].mxu0
        %v826 = vadd.f32 %v557, %v825
        %v827 = vpop.f32.mrb[0].mxu0
        %v828 = vadd.f32 %v557, %v827
        %829 = vmatprep.mubr.f32.mxu0 0.0
        %830 = vmatmul.mubr.f32.gmra.mrb[0].mxu0 %v671
        %v831 = vpop.f32.mrb[0].mxu0
        %v832 = vadd.f32 %v562, %v831
        %v833 = vpop.f32.mrb[0].mxu0
        %v834 = vadd.f32 %v562, %v833
        %835 = vmatprep.mubr.f32.mxu0 0.0
        %836 = vmatmul.mubr.f32.gmra.mrb[0].mxu0 %v674
        %v837 = vpop.f32.mrb[0].mxu0
        %v838 = vadd.f32 %v567, %v837
        %v839 = vpop.f32.mrb[0].mxu0
        %v840 = vadd.f32 %v567, %v839
        %841 = vmatprep.mubr.f32.mxu0 0.0
        %842 = vmatmul.mubr.f32.gmra.mrb[0].mxu0 %v677
        %v843 = vpop.f32.mrb[0].mxu0
        %v844 = vadd.f32 %v572, %v843
        %v845 = vpop.f32.mrb[0].mxu0
        %v846 = vadd.f32 %v572, %v845
        %847 = vmatprep.mubr.f32.mxu0 0.0
        %848 = vmatmul.mubr.f32.gmra.mrb[0].mxu0 %v680
        %v849 = vpop.f32.mrb[0].mxu0
        %v850 = vadd.f32 %v577, %v849
        %v851 = vpop.f32.mrb[0].mxu0
        %v852 = vadd.f32 %v577, %v851
        %853 = vmatprep.mubr.f32.mxu0 0.0
        %854 = vmatmul.mubr.f32.gmra.mrb[0].mxu0 %v683
        %v855 = vpop.f32.mrb[0].mxu0
        %v856 = vadd.f32 %v582, %v855
        %v857 = vpop.f32.mrb[0].mxu0
        %v858 = vadd.f32 %v582, %v857
        %859 = vmatprep.mubr.f32.mxu0 0.0
        %860 = vmatmul.mubr.f32.gmra.mrb[0].mxu0 %v686
        %v861 = vpop.f32.mrb[0].mxu0
        %v862 = vadd.f32 %v587, %v861
        %v863 = vpop.f32.mrb[0].mxu0
        %v864 = vadd.f32 %v587, %v863
        %865 = vmatprep.mubr.f32.mxu0 0.0
        %866 = vmatmul.mubr.f32.gmra.mrb[0].mxu0 %v689
        %v867 = vpop.f32.mrb[0].mxu0
        %v868 = vadd.f32 %v592, %v867
        %v869 = vpop.f32.mrb[0].mxu0
        %v870 = vadd.f32 %v592, %v869
        %871 = vmatprep.mubr.f32.mxu0 0.0
        %872 = vmatmul.mubr.f32.gmra.mrb[0].mxu0 %v692
        %v873 = vpop.f32.mrb[0].mxu0
        %v874 = vadd.f32 %v597, %v873
        %v875 = vpop.f32.mrb[0].mxu0
        %v876 = vadd.f32 %v597, %v875
        %877 = vmatprep.mubr.f32.mxu0 0.0
        %878 = vmatmul.mubr.f32.gmra.mrb[0].mxu0 %v695
        %v879 = vpop.f32.mrb[0].mxu0
        %v880 = vadd.f32 %v602, %v879
        %v881 = vpop.f32.mrb[0].mxu0
        %v882 = vadd.f32 %v602, %v881
        %883 = vmatprep.mubr.f32.mxu0 0.0
        %884 = vmatmul.mubr.f32.gmra.mrb[0].mxu0 %v698
        %v885 = vpop.f32.mrb[0].mxu0
        %v886 = vadd.f32 %v607, %v885
        %v887 = vpop.f32.mrb[0].mxu0
        %v888 = vadd.f32 %v607, %v887
        %889 = vmatprep.mubr.f32.mxu0 0.0
        %890 = vmatmul.mubr.f32.gmra.mrb[0].mxu0 %v701
        %v891 = vpop.f32.mrb[0].mxu0
        %v892 = vadd.f32 %v612, %v891
        %v893 = vpop.f32.mrb[0].mxu0
        %v894 = vadd.f32 %v612, %v893
        %895 = vmatprep.mubr.f32.mxu0 0.0
        %896 = vmatmul.mubr.f32.gmra.mrb[0].mxu0 %v704
        %v897 = vpop.f32.mrb[0].mxu0
        %v898 = vadd.f32 %v617, %v897
        %v899 = vpop.f32.mrb[0].mxu0
        %v900 = vadd.f32 %v617, %v899
        %901 = vmatprep.mubr.f32.mxu0 0.0
        %902 = vmatmul.mubr.f32.gmra.mrb[0].mxu0 %v707
        %v903 = vpop.f32.mrb[0].mxu0
        %v904 = vadd.f32 %v622, %v903
        %v905 = vpop.f32.mrb[0].mxu0
        %v906 = vadd.f32 %v622, %v905
        %907 = vmatprep.mubr.f32.mxu0 0.0
        %908 = vmatmul.mubr.f32.gmra.mrb[0].mxu0 %v710
        %v909 = vpop.f32.mrb[0].mxu0
        %v910 = vadd.f32 %v627, %v909
        %v911 = vpop.f32.mrb[0].mxu0
        %v912 = vadd.f32 %v627, %v911
        %913 = vmatprep.mubr.f32.mxu0 0.0
        %914 = vmatmul.mubr.f32.gmra.mrb[0].mxu0 %v713
        %v915 = vpop.f32.mrb[0].mxu0
        %v916 = vadd.f32 %v632, %v915
        %v917 = vpop.f32.mrb[0].mxu0
        %v918 = vadd.f32 %v632, %v917
        %919 = vmatprep.mubr.f32.mxu0 0.0
        %920 = vmatmul.mubr.f32.gmra.mrb[0].mxu0 %v716
        %v921 = vpop.f32.mrb[0].mxu0
        %v922 = vadd.f32 %v637, %v921
        %v923 = vpop.f32.mrb[0].mxu0
        %v924 = vadd.f32 %v637, %v923
        %925 = vmatprep.mubr.f32.mxu0 0.0
        %926 = vmatmul.mubr.f32.gmra.mrb[0].mxu0 %v719
        %v927 = vpop.f32.mrb[0].mxu0
        %v928 = vadd.f32 %v642, %v927
        %v929 = vpop.f32.mrb[0].mxu0
        %v930 = vadd.f32 %v642, %v929
        %931 = vmatprep.mubr.f32.mxu0 0.0
        %932 = vmatmul.mubr.f32.gmra.mrb[0].mxu0 %v722
        %v933 = vpop.f32.mrb[0].mxu0
        %v934 = vadd.f32 %v647, %v933
        %v935 = vpop.f32.mrb[0].mxu0
        %v936 = vadd.f32 %v647, %v935
        %937 = vdwg.mxu0
        %v938 = vld [vmem:[%s4] sm:$0xff]
        %v939 = vld [vmem:[%s4 + $0x8] sm:$0xff]
        %v940 = vld [vmem:[%s4 + $0x10] sm:$0xff]
        %v941 = vld [vmem:[%s4 + $0x18] sm:$0xff]
        %v943 = vcombine.high %v479, %v479
        %v944 = vrot.slane %v479, 2
        %v945 = vrot.slane %v943, 2
        %vm946 = vcmask 15360
        %v948 = vsel %vm946, %v938, 0
        %v951 = vsel %vm946, %v939, 0
        %v954 = vsel %vm946, %v940, 0
        %v957 = vsel %vm946, %v941, 0
        %vm959 = vcmask 1041408
        %v960 = vsel %vm959, %v944, 0
        %v962 = vsel %vm959, %v945, 0
        %964 = vmatprep.subr.mxu0 %v962
        %965 = vmatpush1.msra.mxu0 %v960
        %966 = vmatprep.subr.mxu0 0.0
        %967 = vmatpush1.msra.mxu0 0.0
        %968 = vmatprep.subr.mxu0 0.0
        %969 = vmatpush1.msra.mxu0 0.0
        %970 = vmatprep.subr.mxu0 0.0
        %971 = vmatpush1.msra.mxu0 0.0
        %972 = vmatprep.subr.mxu0 0.0
        %973 = vmatpush1.msra.mxu0 0.0
        %974 = vmatprep.subr.mxu0 0.0
        %975 = vmatpush1.msra.mxu0 0.0
        %976 = vmatprep.subr.mxu0 0.0
        %977 = vmatpush1.msra.mxu0 0.0
        %978 = vmatprep.subr.mxu0 0.0
        %979 = vmatpush1.msra.mxu0 0.0
        %980 = vmatprep.subr.mxu0 0.0
        %981 = vmatpush1.msra.mxu0 0.0
        %982 = vmatprep.subr.mxu0 0.0
        %983 = vmatpush1.msra.mxu0 0.0
        %984 = vmatprep.subr.mxu0 0.0
        %985 = vmatpush1.msra.mxu0 0.0
        %986 = vmatprep.subr.mxu0 0.0
        %987 = vmatpush1.msra.mxu0 0.0
        %988 = vmatprep.subr.mxu0 0.0
        %989 = vmatpush1.msra.mxu0 0.0
        %990 = vmatprep.subr.mxu0 0.0
        %991 = vmatpush1.msra.mxu0 0.0
        %992 = vmatprep.subr.mxu0 0.0
        %993 = vmatpush1.msra.mxu0 0.0
        %994 = vmatprep.subr.mxu0 0.0
        %995 = vmatpush1.msra.mxu0 0.0
        %996 = vmatprep.subr.mxu0 0.0
        %997 = vmatpush1.msra.mxu0 0.0
        %998 = vmatprep.subr.mxu0 0.0
        %999 = vmatpush1.msra.mxu0 0.0
        %1000 = vmatprep.subr.mxu0 0.0
        %1001 = vmatpush1.msra.mxu0 0.0
        %1002 = vmatprep.subr.mxu0 0.0
        %1003 = vmatpush1.msra.mxu0 0.0
        %1004 = vmatprep.subr.mxu0 0.0
        %1005 = vmatpush1.msra.mxu0 0.0
        %1006 = vmatprep.subr.mxu0 0.0
        %1007 = vmatpush1.msra.mxu0 0.0
        %1008 = vmatprep.subr.mxu0 0.0
        %1009 = vmatpush1.msra.mxu0 0.0
        %1010 = vmatprep.subr.mxu0 0.0
        %1011 = vmatpush1.msra.mxu0 0.0
        %1012 = vmatprep.subr.mxu0 0.0
        %1013 = vmatpush1.msra.mxu0 0.0
        %1014 = vmatprep.subr.mxu0 0.0
        %1015 = vmatpush1.msra.mxu0 0.0
        %1016 = vmatprep.subr.mxu0 0.0
        %1017 = vmatpush1.msra.mxu0 0.0
        %1018 = vmatprep.subr.mxu0 0.0
        %1019 = vmatpush1.msra.mxu0 0.0
        %1020 = vmatprep.subr.mxu0 0.0
        %1021 = vmatpush1.msra.mxu0 0.0
        %1022 = vmatprep.subr.mxu0 0.0
        %1023 = vmatpush1.msra.mxu0 0.0
        %1024 = vmatprep.subr.mxu0 0.0
        %1025 = vmatpush1.msra.mxu0 0.0
        %1026 = vmatprep.subr.mxu0 0.0
        %1027 = vmatpush1.msra.mxu0 0.0
        %1028 = vmatprep.mubr.f32.mxu0 0.0
        %1029 = vmatmul.mubr.f32.gmra.mrb[0].mxu0 %v948
        %v1030 = vpop.f32.mrb[0].mxu0
        %v1031 = vadd.f32 %v796, %v1030
        %v1032 = vpop.f32.mrb[0].mxu0
        %v1033 = vadd.f32 %v798, %v1032
        %1034 = vmatprep.mubr.f32.mxu0 0.0
        %1035 = vmatmul.mubr.f32.gmra.mrb[0].mxu0 %v951
        %v1036 = vpop.f32.mrb[0].mxu0
        %v1037 = vadd.f32 %v802, %v1036
        %v1038 = vpop.f32.mrb[0].mxu0
        %v1039 = vadd.f32 %v804, %v1038
        %1040 = vmatprep.mubr.f32.mxu0 0.0
        %1041 = vmatmul.mubr.f32.gmra.mrb[0].mxu0 %v954
        %v1042 = vpop.f32.mrb[0].mxu0
        %v1043 = vadd.f32 %v808, %v1042
        %v1044 = vpop.f32.mrb[0].mxu0
        %v1045 = vadd.f32 %v810, %v1044
        %1046 = vmatprep.mubr.f32.mxu0 0.0
        %1047 = vmatmul.mubr.f32.gmra.mrb[0].mxu0 %v957
        %v1048 = vpop.f32.mrb[0].mxu0
        %v1049 = vadd.f32 %v814, %v1048
        %v1050 = vpop.f32.mrb[0].mxu0
        %v1051 = vadd.f32 %v816, %v1050
        %1052 = vdwg.mxu0
        %v1053 = vmax.f32 %v1031, 0.0
        %v1054 = vmax.f32 %v1033, 0.0
        %v1055 = vmax.f32 %v1037, 0.0
        %v1056 = vmax.f32 %v1039, 0.0
        %v1057 = vmax.f32 %v1043, 0.0
        %v1058 = vmax.f32 %v1045, 0.0
        %v1059 = vmax.f32 %v1049, 0.0
        %v1060 = vmax.f32 %v1051, 0.0
        %v1061 = vld [vmem:[%s5] sm:$0x3]
        %vm1062 = vcmask 261120
        %v1064 = vsel %vm1062, %v1061, 0
        %1066 = vmatprep.subr.mxu0 %v1054
        %1067 = vmatpush1.msra.mxu0 %v1053
        %1068 = vmatprep.subr.mxu0 %v1056
        %1069 = vmatpush1.msra.mxu0 %v1055
        %1070 = vmatprep.subr.mxu0 %v1058
        %1071 = vmatpush1.msra.mxu0 %v1057
        %1072 = vmatprep.subr.mxu0 %v1060
        %1073 = vmatpush1.msra.mxu0 %v1059
        %1074 = vmatprep.subr.mxu0 0.0
        %1075 = vmatpush1.msra.mxu0 0.0
        %1076 = vmatprep.subr.mxu0 0.0
        %1077 = vmatpush1.msra.mxu0 0.0
        %1078 = vmatprep.subr.mxu0 0.0
        %1079 = vmatpush1.msra.mxu0 0.0
        %1080 = vmatprep.subr.mxu0 0.0
        %1081 = vmatpush1.msra.mxu0 0.0
        %1082 = vmatprep.subr.mxu0 0.0
        %1083 = vmatpush1.msra.mxu0 0.0
        %1084 = vmatprep.subr.mxu0 0.0
        %1085 = vmatpush1.msra.mxu0 0.0
        %1086 = vmatprep.subr.mxu0 0.0
        %1087 = vmatpush1.msra.mxu0 0.0
        %1088 = vmatprep.subr.mxu0 0.0
        %1089 = vmatpush1.msra.mxu0 0.0
        %1090 = vmatprep.subr.mxu0 0.0
        %1091 = vmatpush1.msra.mxu0 0.0
        %1092 = vmatprep.subr.mxu0 0.0
        %1093 = vmatpush1.msra.mxu0 0.0
        %1094 = vmatprep.subr.mxu0 0.0
        %1095 = vmatpush1.msra.mxu0 0.0
        %1096 = vmatprep.subr.mxu0 0.0
        %1097 = vmatpush1.msra.mxu0 0.0
        %1098 = vmatprep.subr.mxu0 0.0
        %1099 = vmatpush1.msra.mxu0 0.0
        %1100 = vmatprep.subr.mxu0 0.0
        %1101 = vmatpush1.msra.mxu0 0.0
        %1102 = vmatprep.subr.mxu0 0.0
        %1103 = vmatpush1.msra.mxu0 0.0
        %1104 = vmatprep.subr.mxu0 0.0
        %1105 = vmatpush1.msra.mxu0 0.0
        %1106 = vmatprep.subr.mxu0 0.0
        %1107 = vmatpush1.msra.mxu0 0.0
        %1108 = vmatprep.subr.mxu0 0.0
        %1109 = vmatpush1.msra.mxu0 0.0
        %1110 = vmatprep.subr.mxu0 0.0
        %1111 = vmatpush1.msra.mxu0 0.0
        %1112 = vmatprep.subr.mxu0 0.0
        %1113 = vmatpush1.msra.mxu0 0.0
        %1114 = vmatprep.subr.mxu0 0.0
        %1115 = vmatpush1.msra.mxu0 0.0
        %1116 = vmatprep.subr.mxu0 0.0
        %1117 = vmatpush1.msra.mxu0 0.0
        %1118 = vmatprep.subr.mxu0 0.0
        %1119 = vmatpush1.msra.mxu0 0.0
        %1120 = vmatprep.subr.mxu0 0.0
        %1121 = vmatpush1.msra.mxu0 0.0
        %1122 = vmatprep.subr.mxu0 0.0
        %1123 = vmatpush1.msra.mxu0 0.0
        %1124 = vmatprep.subr.mxu0 0.0
        %1125 = vmatpush1.msra.mxu0 0.0
        %1126 = vmatprep.subr.mxu0 0.0
        %1127 = vmatpush1.msra.mxu0 0.0
        %1128 = vmatprep.subr.mxu0 0.0
        %1129 = vmatpush1.msra.mxu0 0.0
        %1130 = vmatprep.mubr.f32.mxu0 0.0
        %1131 = vmatmul.mubr.f32.gmra.mrb[0].mxu0 %v1064
        %v1132 = vpop.f32.mrb[0].mxu0
        %v1133 = vadd.f32 0.0, %v1132
        %v1134 = vpop.f32.mrb[0].mxu0
        %v1135 = vadd.f32 0.0, %v1134
        %1136 = vdwg.mxu0
        %v1139 = vcombine.low %v1133, %v1135
        %v1141 = vadd.f32 %v479, %v1139
        %v1142 = vld [vmem:[%s6] sm:$0x3]
        %1144 = vset.pattern.permute.xlu0 0
        %1145 = vperm.xlu0 %1144, %v1142
        %v1146 = vpop.permute.xlu0 %1145
        %v1148 = vunpack.c.l.s4 839922192
        %v1149 = vunpack.c.0.s8 %v1148
        %v1150 = vlaneseq
        %v1151 = vshrl.u32 %v1150, 7
        %v1152 = vsub.s32 %v1149, %v1151
        %v1153 = vrot.slane %v1146, %v1152
        %v1155 = vadd.f32 %v1141, %v1153
        %v1156 = vld [vmem:[%s7] sm:$0xff]
        %v1157 = vld [vmem:[%s7 + $0x8] sm:$0xff]
        %v1158 = vld [vmem:[%s7 + $0x10] sm:$0xff]
        %v1159 = vld [vmem:[%s7 + $0x18] sm:$0xff]
        %v1160 = vld [vmem:[%s7 + $0x20] sm:$0xff]
        %v1161 = vld [vmem:[%s7 + $0x28] sm:$0xff]
        %v1162 = vld [vmem:[%s7 + $0x30] sm:$0xff]
        %v1163 = vld [vmem:[%s7 + $0x38] sm:$0xff]
        %v1165 = vcombine.high %v1155, %v1155
        %v1167 = vsel %vm946, %v1156, 0
        %v1170 = vsel %vm946, %v1157, 0
        %v1173 = vsel %vm946, %v1158, 0
        %v1176 = vsel %vm946, %v1159, 0
        %v1179 = vsel %vm946, %v1160, 0
        %v1182 = vsel %vm946, %v1161, 0
        %v1185 = vsel %vm946, %v1162, 0
        %v1188 = vsel %vm946, %v1163, 0
        %v1190 = vsel %vm959, %v1155, 0
        %v1192 = vsel %vm959, %v1165, 0
        %1194 = vmatprep.subr.mxu0 %v1192
        %1195 = vmatpush1.msra.mxu0 %v1190
        %1196 = vmatprep.subr.mxu0 0.0
        %1197 = vmatpush1.msra.mxu0 0.0
        %1198 = vmatprep.subr.mxu0 0.0
        %1199 = vmatpush1.msra.mxu0 0.0
        %1200 = vmatprep.subr.mxu0 0.0
        %1201 = vmatpush1.msra.mxu0 0.0
        %1202 = vmatprep.subr.mxu0 0.0
        %1203 = vmatpush1.msra.mxu0 0.0
        %1204 = vmatprep.subr.mxu0 0.0
        %1205 = vmatpush1.msra.mxu0 0.0
        %1206 = vmatprep.subr.mxu0 0.0
        %1207 = vmatpush1.msra.mxu0 0.0
        %1208 = vmatprep.subr.mxu0 0.0
        %1209 = vmatpush1.msra.mxu0 0.0
        %1210 = vmatprep.subr.mxu0 0.0
        %1211 = vmatpush1.msra.mxu0 0.0
        %1212 = vmatprep.subr.mxu0 0.0
        %1213 = vmatpush1.msra.mxu0 0.0
        %1214 = vmatprep.subr.mxu0 0.0
        %1215 = vmatpush1.msra.mxu0 0.0
        %1216 = vmatprep.subr.mxu0 0.0
        %1217 = vmatpush1.msra.mxu0 0.0
        %1218 = vmatprep.subr.mxu0 0.0
        %1219 = vmatpush1.msra.mxu0 0.0
        %1220 = vmatprep.subr.mxu0 0.0
        %1221 = vmatpush1.msra.mxu0 0.0
        %1222 = vmatprep.subr.mxu0 0.0
        %1223 = vmatpush1.msra.mxu0 0.0
        %1224 = vmatprep.subr.mxu0 0.0
        %1225 = vmatpush1.msra.mxu0 0.0
        %1226 = vmatprep.subr.mxu0 0.0
        %1227 = vmatpush1.msra.mxu0 0.0
        %1228 = vmatprep.subr.mxu0 0.0
        %1229 = vmatpush1.msra.mxu0 0.0
        %1230 = vmatprep.subr.mxu0 0.0
        %1231 = vmatpush1.msra.mxu0 0.0
        %1232 = vmatprep.subr.mxu0 0.0
        %1233 = vmatpush1.msra.mxu0 0.0
        %1234 = vmatprep.subr.mxu0 0.0
        %1235 = vmatpush1.msra.mxu0 0.0
        %1236 = vmatprep.subr.mxu0 0.0
        %1237 = vmatpush1.msra.mxu0 0.0
        %1238 = vmatprep.subr.mxu0 0.0
        %1239 = vmatpush1.msra.mxu0 0.0
        %1240 = vmatprep.subr.mxu0 0.0
        %1241 = vmatpush1.msra.mxu0 0.0
        %1242 = vmatprep.subr.mxu0 0.0
        %1243 = vmatpush1.msra.mxu0 0.0
        %1244 = vmatprep.subr.mxu0 0.0
        %1245 = vmatpush1.msra.mxu0 0.0
        %1246 = vmatprep.subr.mxu0 0.0
        %1247 = vmatpush1.msra.mxu0 0.0
        %1248 = vmatprep.subr.mxu0 0.0
        %1249 = vmatpush1.msra.mxu0 0.0
        %1250 = vmatprep.subr.mxu0 0.0
        %1251 = vmatpush1.msra.mxu0 0.0
        %1252 = vmatprep.subr.mxu0 0.0
        %1253 = vmatpush1.msra.mxu0 0.0
        %1254 = vmatprep.subr.mxu0 0.0
        %1255 = vmatpush1.msra.mxu0 0.0
        %1256 = vmatprep.subr.mxu0 0.0
        %1257 = vmatpush1.msra.mxu0 0.0
        %1258 = vmatprep.mubr.f32.mxu0 0.0
        %1259 = vmatmul.mubr.f32.gmra.mrb[0].mxu0 %v1167
        %v1260 = vpop.f32.mrb[0].mxu0
        %v1261 = vadd.f32 %v820, %v1260
        %v1262 = vpop.f32.mrb[0].mxu0
        %v1263 = vadd.f32 %v822, %v1262
        %1264 = vmatprep.mubr.f32.mxu0 0.0
        %1265 = vmatmul.mubr.f32.gmra.mrb[0].mxu0 %v1170
        %v1266 = vpop.f32.mrb[0].mxu0
        %v1267 = vadd.f32 %v826, %v1266
        %v1268 = vpop.f32.mrb[0].mxu0
        %v1269 = vadd.f32 %v828, %v1268
        %1270 = vmatprep.mubr.f32.mxu0 0.0
        %1271 = vmatmul.mubr.f32.gmra.mrb[0].mxu0 %v1173
        %v1272 = vpop.f32.mrb[0].mxu0
        %v1273 = vadd.f32 %v832, %v1272
        %v1274 = vpop.f32.mrb[0].mxu0
        %v1275 = vadd.f32 %v834, %v1274
        %1276 = vmatprep.mubr.f32.mxu0 0.0
        %1277 = vmatmul.mubr.f32.gmra.mrb[0].mxu0 %v1176
        %v1278 = vpop.f32.mrb[0].mxu0
        %v1279 = vadd.f32 %v838, %v1278
        %v1280 = vpop.f32.mrb[0].mxu0
        %v1281 = vadd.f32 %v840, %v1280
        %1282 = vmatprep.mubr.f32.mxu0 0.0
        %1283 = vmatmul.mubr.f32.gmra.mrb[0].mxu0 %v1179
        %v1284 = vpop.f32.mrb[0].mxu0
        %v1285 = vadd.f32 %v844, %v1284
        %v1286 = vpop.f32.mrb[0].mxu0
        %v1287 = vadd.f32 %v846, %v1286
        %1288 = vmatprep.mubr.f32.mxu0 0.0
        %1289 = vmatmul.mubr.f32.gmra.mrb[0].mxu0 %v1182
        %v1290 = vpop.f32.mrb[0].mxu0
        %v1291 = vadd.f32 %v850, %v1290
        %v1292 = vpop.f32.mrb[0].mxu0
        %v1293 = vadd.f32 %v852, %v1292
        %1294 = vmatprep.mubr.f32.mxu0 0.0
        %1295 = vmatmul.mubr.f32.gmra.mrb[0].mxu0 %v1185
        %v1296 = vpop.f32.mrb[0].mxu0
        %v1297 = vadd.f32 %v856, %v1296
        %v1298 = vpop.f32.mrb[0].mxu0
        %v1299 = vadd.f32 %v858, %v1298
        %1300 = vmatprep.mubr.f32.mxu0 0.0
        %1301 = vmatmul.mubr.f32.gmra.mrb[0].mxu0 %v1188
        %v1302 = vpop.f32.mrb[0].mxu0
        %v1303 = vadd.f32 %v862, %v1302
        %v1304 = vpop.f32.mrb[0].mxu0
        %v1305 = vadd.f32 %v864, %v1304
        %1306 = vdwg.mxu0
        %v1307 = vmax.f32 %v1261, 0.0
        %v1308 = vmax.f32 %v1263, 0.0
        %v1309 = vmax.f32 %v1267, 0.0
        %v1310 = vmax.f32 %v1269, 0.0
        %v1311 = vmax.f32 %v1273, 0.0
        %v1312 = vmax.f32 %v1275, 0.0
        %v1313 = vmax.f32 %v1279, 0.0
        %v1314 = vmax.f32 %v1281, 0.0
        %v1315 = vmax.f32 %v1285, 0.0
        %v1316 = vmax.f32 %v1287, 0.0
        %v1317 = vmax.f32 %v1291, 0.0
        %v1318 = vmax.f32 %v1293, 0.0
        %v1319 = vmax.f32 %v1297, 0.0
        %v1320 = vmax.f32 %v1299, 0.0
        %v1321 = vmax.f32 %v1303, 0.0
        %v1322 = vmax.f32 %v1305, 0.0
        %v1323 = vld [vmem:[%s8] sm:$0x3]
        %v1324 = vld [vmem:[%s9] sm:$0x3]
        %1326 = vset.pattern.permute.xlu0 0
        %1327 = vperm.xlu0 %1326, %v1324
        %v1328 = vpop.permute.xlu0 %1327
        %v1331 = vsel %vm1062, %v1323, 0
        %1333 = vmatprep.subr.mxu0 %v1308
        %1334 = vmatpush1.msra.mxu0 %v1307
        %1335 = vmatprep.subr.mxu0 %v1310
        %1336 = vmatpush1.msra.mxu0 %v1309
        %1337 = vmatprep.subr.mxu0 %v1312
        %1338 = vmatpush1.msra.mxu0 %v1311
        %1339 = vmatprep.subr.mxu0 %v1314
        %1340 = vmatpush1.msra.mxu0 %v1313
        %1341 = vmatprep.subr.mxu0 0.0
        %1342 = vmatpush1.msra.mxu0 0.0
        %1343 = vmatprep.subr.mxu0 0.0
        %1344 = vmatpush1.msra.mxu0 0.0
        %1345 = vmatprep.subr.mxu0 0.0
        %1346 = vmatpush1.msra.mxu0 0.0
        %1347 = vmatprep.subr.mxu0 0.0
        %1348 = vmatpush1.msra.mxu0 0.0
        %1349 = vmatprep.subr.mxu0 0.0
        %1350 = vmatpush1.msra.mxu0 0.0
        %1351 = vmatprep.subr.mxu0 0.0
        %1352 = vmatpush1.msra.mxu0 0.0
        %1353 = vmatprep.subr.mxu0 0.0
        %1354 = vmatpush1.msra.mxu0 0.0
        %1355 = vmatprep.subr.mxu0 0.0
        %1356 = vmatpush1.msra.mxu0 0.0
        %1357 = vmatprep.subr.mxu0 0.0
        %1358 = vmatpush1.msra.mxu0 0.0
        %1359 = vmatprep.subr.mxu0 0.0
        %1360 = vmatpush1.msra.mxu0 0.0
        %1361 = vmatprep.subr.mxu0 0.0
        %1362 = vmatpush1.msra.mxu0 0.0
        %1363 = vmatprep.subr.mxu0 0.0
        %1364 = vmatpush1.msra.mxu0 0.0
        %1365 = vmatprep.subr.mxu0 0.0
        %1366 = vmatpush1.msra.mxu0 0.0
        %1367 = vmatprep.subr.mxu0 0.0
        %1368 = vmatpush1.msra.mxu0 0.0
        %1369 = vmatprep.subr.mxu0 0.0
        %1370 = vmatpush1.msra.mxu0 0.0
        %1371 = vmatprep.subr.mxu0 0.0
        %1372 = vmatpush1.msra.mxu0 0.0
        %1373 = vmatprep.subr.mxu0 0.0
        %1374 = vmatpush1.msra.mxu0 0.0
        %1375 = vmatprep.subr.mxu0 0.0
        %1376 = vmatpush1.msra.mxu0 0.0
        %1377 = vmatprep.subr.mxu0 0.0
        %1378 = vmatpush1.msra.mxu0 0.0
        %1379 = vmatprep.subr.mxu0 0.0
        %1380 = vmatpush1.msra.mxu0 0.0
        %1381 = vmatprep.subr.mxu0 0.0
        %1382 = vmatpush1.msra.mxu0 0.0
        %1383 = vmatprep.subr.mxu0 0.0
        %1384 = vmatpush1.msra.mxu0 0.0
        %1385 = vmatprep.subr.mxu0 0.0
        %1386 = vmatpush1.msra.mxu0 0.0
        %1387 = vmatprep.subr.mxu0 0.0
        %1388 = vmatpush1.msra.mxu0 0.0
        %1389 = vmatprep.subr.mxu0 0.0
        %1390 = vmatpush1.msra.mxu0 0.0
        %1391 = vmatprep.subr.mxu0 0.0
        %1392 = vmatpush1.msra.mxu0 0.0
        %1393 = vmatprep.subr.mxu0 0.0
        %1394 = vmatpush1.msra.mxu0 0.0
        %1395 = vmatprep.subr.mxu0 0.0
        %1396 = vmatpush1.msra.mxu0 0.0
        %1397 = vmatprep.mubr.f32.mxu0 0.0
        %1398 = vmatmul.mubr.f32.gmra.mrb[0].mxu0 %v1331
        %v1399 = vpop.f32.mrb[0].mxu0
        %v1400 = vadd.f32 %v1328, %v1399
        %v1401 = vpop.f32.mrb[0].mxu0
        %v1402 = vadd.f32 %v1328, %v1401
        %1403 = vdwg.mxu0
        %v1404 = vld [vmem:[%s10] sm:$0x3]
        %v1405 = vld [vmem:[%s11] sm:$0x3]
        %1407 = vset.pattern.permute.xlu0 0
        %1408 = vperm.xlu0 %1407, %v1405
        %v1409 = vpop.permute.xlu0 %1408
        %v1412 = vsel %vm1062, %v1404, 0
        %1414 = vmatprep.subr.mxu0 %v1316
        %1415 = vmatpush1.msra.mxu0 %v1315
        %1416 = vmatprep.subr.mxu0 %v1318
        %1417 = vmatpush1.msra.mxu0 %v1317
        %1418 = vmatprep.subr.mxu0 %v1320
        %1419 = vmatpush1.msra.mxu0 %v1319
        %1420 = vmatprep.subr.mxu0 %v1322
        %1421 = vmatpush1.msra.mxu0 %v1321
        %1422 = vmatprep.subr.mxu0 0.0
        %1423 = vmatpush1.msra.mxu0 0.0
        %1424 = vmatprep.subr.mxu0 0.0
        %1425 = vmatpush1.msra.mxu0 0.0
        %1426 = vmatprep.subr.mxu0 0.0
        %1427 = vmatpush1.msra.mxu0 0.0
        %1428 = vmatprep.subr.mxu0 0.0
        %1429 = vmatpush1.msra.mxu0 0.0
        %1430 = vmatprep.subr.mxu0 0.0
        %1431 = vmatpush1.msra.mxu0 0.0
        %1432 = vmatprep.subr.mxu0 0.0
        %1433 = vmatpush1.msra.mxu0 0.0
        %1434 = vmatprep.subr.mxu0 0.0
        %1435 = vmatpush1.msra.mxu0 0.0
        %1436 = vmatprep.subr.mxu0 0.0
        %1437 = vmatpush1.msra.mxu0 0.0
        %1438 = vmatprep.subr.mxu0 0.0
        %1439 = vmatpush1.msra.mxu0 0.0
        %1440 = vmatprep.subr.mxu0 0.0
        %1441 = vmatpush1.msra.mxu0 0.0
        %1442 = vmatprep.subr.mxu0 0.0
        %1443 = vmatpush1.msra.mxu0 0.0
        %1444 = vmatprep.subr.mxu0 0.0
        %1445 = vmatpush1.msra.mxu0 0.0
        %1446 = vmatprep.subr.mxu0 0.0
        %1447 = vmatpush1.msra.mxu0 0.0
        %1448 = vmatprep.subr.mxu0 0.0
        %1449 = vmatpush1.msra.mxu0 0.0
        %1450 = vmatprep.subr.mxu0 0.0
        %1451 = vmatpush1.msra.mxu0 0.0
        %1452 = vmatprep.subr.mxu0 0.0
        %1453 = vmatpush1.msra.mxu0 0.0
        %1454 = vmatprep.subr.mxu0 0.0
        %1455 = vmatpush1.msra.mxu0 0.0
        %1456 = vmatprep.subr.mxu0 0.0
        %1457 = vmatpush1.msra.mxu0 0.0
        %1458 = vmatprep.subr.mxu0 0.0
        %1459 = vmatpush1.msra.mxu0 0.0
        %1460 = vmatprep.subr.mxu0 0.0
        %1461 = vmatpush1.msra.mxu0 0.0
        %1462 = vmatprep.subr.mxu0 0.0
        %1463 = vmatpush1.msra.mxu0 0.0
        %1464 = vmatprep.subr.mxu0 0.0
        %1465 = vmatpush1.msra.mxu0 0.0
        %1466 = vmatprep.subr.mxu0 0.0
        %1467 = vmatpush1.msra.mxu0 0.0
        %1468 = vmatprep.subr.mxu0 0.0
        %1469 = vmatpush1.msra.mxu0 0.0
        %1470 = vmatprep.subr.mxu0 0.0
        %1471 = vmatpush1.msra.mxu0 0.0
        %1472 = vmatprep.subr.mxu0 0.0
        %1473 = vmatpush1.msra.mxu0 0.0
        %1474 = vmatprep.subr.mxu0 0.0
        %1475 = vmatpush1.msra.mxu0 0.0
        %1476 = vmatprep.subr.mxu0 0.0
        %1477 = vmatpush1.msra.mxu0 0.0
        %1478 = vmatprep.mubr.f32.mxu0 0.0
        %1479 = vmatmul.mubr.f32.gmra.mrb[0].mxu0 %v1412
        %v1480 = vpop.f32.mrb[0].mxu0
        %v1481 = vadd.f32 %v1409, %v1480
        %v1482 = vpop.f32.mrb[0].mxu0
        %v1483 = vadd.f32 %v1409, %v1482
        %1484 = vdwg.mxu0
        %v1485 = vtanh.pop %v1400
        %v1486 = vtanh.pop %v1402
        %v1487 = vmul.f32 %v1485, 1.442695
        %v1488 = vpow.pop %v1487
        %v1489 = vmul.f32 %v1486, 1.442695
        %v1490 = vpow.pop %v1489
        %v1493 = vcombine.low %v1488, %v1490
        %v1494 = vrot.slane %v1493, 6
        %v1496 = vmul.f32 %v479, %v1494
        %v1499 = vcombine.low %v1481, %v1483
        %v1500 = vrot.slane %v1499, 6
        %v1502 = vadd.f32 %v1496, %v1500
        %s1503 = scalar_lea.vmem %s4, 32
        %v1504 = vld [vmem:[%s1503] sm:$0xff]
        %v1505 = vld [vmem:[%s1503 + $0x8] sm:$0xff]
        %v1506 = vld [vmem:[%s1503 + $0x10] sm:$0xff]
        %v1507 = vld [vmem:[%s1503 + $0x18] sm:$0xff]
        %v1509 = vcombine.high %v1502, %v1502
        %v1510 = vrot.slane %v1502, 2
        %v1511 = vrot.slane %v1509, 2
        %v1513 = vsel %vm946, %v1504, 0
        %v1516 = vsel %vm946, %v1505, 0
        %v1519 = vsel %vm946, %v1506, 0
        %v1522 = vsel %vm946, %v1507, 0
        %v1524 = vsel %vm959, %v1510, 0
        %v1526 = vsel %vm959, %v1511, 0
        %1528 = vmatprep.subr.mxu0 %v1526
        %1529 = vmatpush1.msra.mxu0 %v1524
        %1530 = vmatprep.subr.mxu0 0.0
        %1531 = vmatpush1.msra.mxu0 0.0
        %1532 = vmatprep.subr.mxu0 0.0
        %1533 = vmatpush1.msra.mxu0 0.0
        %1534 = vmatprep.subr.mxu0 0.0
        %1535 = vmatpush1.msra.mxu0 0.0
        %1536 = vmatprep.subr.mxu0 0.0
        %1537 = vmatpush1.msra.mxu0 0.0
        %1538 = vmatprep.subr.mxu0 0.0
        %1539 = vmatpush1.msra.mxu0 0.0
        %1540 = vmatprep.subr.mxu0 0.0
        %1541 = vmatpush1.msra.mxu0 0.0
        %1542 = vmatprep.subr.mxu0 0.0
        %1543 = vmatpush1.msra.mxu0 0.0
        %1544 = vmatprep.subr.mxu0 0.0
        %1545 = vmatpush1.msra.mxu0 0.0
        %1546 = vmatprep.subr.mxu0 0.0
        %1547 = vmatpush1.msra.mxu0 0.0
        %1548 = vmatprep.subr.mxu0 0.0
        %1549 = vmatpush1.msra.mxu0 0.0
        %1550 = vmatprep.subr.mxu0 0.0
        %1551 = vmatpush1.msra.mxu0 0.0
        %1552 = vmatprep.subr.mxu0 0.0
        %1553 = vmatpush1.msra.mxu0 0.0
        %1554 = vmatprep.subr.mxu0 0.0
        %1555 = vmatpush1.msra.mxu0 0.0
        %1556 = vmatprep.subr.mxu0 0.0
        %1557 = vmatpush1.msra.mxu0 0.0
        %1558 = vmatprep.subr.mxu0 0.0
        %1559 = vmatpush1.msra.mxu0 0.0
        %1560 = vmatprep.subr.mxu0 0.0
        %1561 = vmatpush1.msra.mxu0 0.0
        %1562 = vmatprep.subr.mxu0 0.0
        %1563 = vmatpush1.msra.mxu0 0.0
        %1564 = vmatprep.subr.mxu0 0.0
        %1565 = vmatpush1.msra.mxu0 0.0
        %1566 = vmatprep.subr.mxu0 0.0
        %1567 = vmatpush1.msra.mxu0 0.0
        %1568 = vmatprep.subr.mxu0 0.0
        %1569 = vmatpush1.msra.mxu0 0.0
        %1570 = vmatprep.subr.mxu0 0.0
        %1571 = vmatpush1.msra.mxu0 0.0
        %1572 = vmatprep.subr.mxu0 0.0
        %1573 = vmatpush1.msra.mxu0 0.0
        %1574 = vmatprep.subr.mxu0 0.0
        %1575 = vmatpush1.msra.mxu0 0.0
        %1576 = vmatprep.subr.mxu0 0.0
        %1577 = vmatpush1.msra.mxu0 0.0
        %1578 = vmatprep.subr.mxu0 0.0
        %1579 = vmatpush1.msra.mxu0 0.0
        %1580 = vmatprep.subr.mxu0 0.0
        %1581 = vmatpush1.msra.mxu0 0.0
        %1582 = vmatprep.subr.mxu0 0.0
        %1583 = vmatpush1.msra.mxu0 0.0
        %1584 = vmatprep.subr.mxu0 0.0
        %1585 = vmatpush1.msra.mxu0 0.0
        %1586 = vmatprep.subr.mxu0 0.0
        %1587 = vmatpush1.msra.mxu0 0.0
        %1588 = vmatprep.subr.mxu0 0.0
        %1589 = vmatpush1.msra.mxu0 0.0
        %1590 = vmatprep.subr.mxu0 0.0
        %1591 = vmatpush1.msra.mxu0 0.0
        %1592 = vmatprep.mubr.f32.mxu0 0.0
        %1593 = vmatmul.mubr.f32.gmra.mrb[0].mxu0 %v1513
        %v1594 = vpop.f32.mrb[0].mxu0
        %v1595 = vadd.f32 %v868, %v1594
        %v1596 = vpop.f32.mrb[0].mxu0
        %v1597 = vadd.f32 %v870, %v1596
        %1598 = vmatprep.mubr.f32.mxu0 0.0
        %1599 = vmatmul.mubr.f32.gmra.mrb[0].mxu0 %v1516
        %v1600 = vpop.f32.mrb[0].mxu0
        %v1601 = vadd.f32 %v874, %v1600
        %v1602 = vpop.f32.mrb[0].mxu0
        %v1603 = vadd.f32 %v876, %v1602
        %1604 = vmatprep.mubr.f32.mxu0 0.0
        %1605 = vmatmul.mubr.f32.gmra.mrb[0].mxu0 %v1519
        %v1606 = vpop.f32.mrb[0].mxu0
        %v1607 = vadd.f32 %v880, %v1606
        %v1608 = vpop.f32.mrb[0].mxu0
        %v1609 = vadd.f32 %v882, %v1608
        %1610 = vmatprep.mubr.f32.mxu0 0.0
        %1611 = vmatmul.mubr.f32.gmra.mrb[0].mxu0 %v1522
        %v1612 = vpop.f32.mrb[0].mxu0
        %v1613 = vadd.f32 %v886, %v1612
        %v1614 = vpop.f32.mrb[0].mxu0
        %v1615 = vadd.f32 %v888, %v1614
        %1616 = vdwg.mxu0
        %v1617 = vmax.f32 %v1595, 0.0
        %v1618 = vmax.f32 %v1597, 0.0
        %v1619 = vmax.f32 %v1601, 0.0
        %v1620 = vmax.f32 %v1603, 0.0
        %v1621 = vmax.f32 %v1607, 0.0
        %v1622 = vmax.f32 %v1609, 0.0
        %v1623 = vmax.f32 %v1613, 0.0
        %v1624 = vmax.f32 %v1615, 0.0
        %s1625 = scalar_lea.vmem %s5, 2
        %v1626 = vld [vmem:[%s1625] sm:$0x3]
        %v1628 = vsel %vm1062, %v1626, 0
        %1630 = vmatprep.subr.mxu0 %v1618
        %1631 = vmatpush1.msra.mxu0 %v1617
        %1632 = vmatprep.subr.mxu0 %v1620
        %1633 = vmatpush1.msra.mxu0 %v1619
        %1634 = vmatprep.subr.mxu0 %v1622
        %1635 = vmatpush1.msra.mxu0 %v1621
        %1636 = vmatprep.subr.mxu0 %v1624
        %1637 = vmatpush1.msra.mxu0 %v1623
        %1638 = vmatprep.subr.mxu0 0.0
        %1639 = vmatpush1.msra.mxu0 0.0
        %1640 = vmatprep.subr.mxu0 0.0
        %1641 = vmatpush1.msra.mxu0 0.0
        %1642 = vmatprep.subr.mxu0 0.0
        %1643 = vmatpush1.msra.mxu0 0.0
        %1644 = vmatprep.subr.mxu0 0.0
        %1645 = vmatpush1.msra.mxu0 0.0
        %1646 = vmatprep.subr.mxu0 0.0
        %1647 = vmatpush1.msra.mxu0 0.0
        %1648 = vmatprep.subr.mxu0 0.0
        %1649 = vmatpush1.msra.mxu0 0.0
        %1650 = vmatprep.subr.mxu0 0.0
        %1651 = vmatpush1.msra.mxu0 0.0
        %1652 = vmatprep.subr.mxu0 0.0
        %1653 = vmatpush1.msra.mxu0 0.0
        %1654 = vmatprep.subr.mxu0 0.0
        %1655 = vmatpush1.msra.mxu0 0.0
        %1656 = vmatprep.subr.mxu0 0.0
        %1657 = vmatpush1.msra.mxu0 0.0
        %1658 = vmatprep.subr.mxu0 0.0
        %1659 = vmatpush1.msra.mxu0 0.0
        %1660 = vmatprep.subr.mxu0 0.0
        %1661 = vmatpush1.msra.mxu0 0.0
        %1662 = vmatprep.subr.mxu0 0.0
        %1663 = vmatpush1.msra.mxu0 0.0
        %1664 = vmatprep.subr.mxu0 0.0
        %1665 = vmatpush1.msra.mxu0 0.0
        %1666 = vmatprep.subr.mxu0 0.0
        %1667 = vmatpush1.msra.mxu0 0.0
        %1668 = vmatprep.subr.mxu0 0.0
        %1669 = vmatpush1.msra.mxu0 0.0
        %1670 = vmatprep.subr.mxu0 0.0
        %1671 = vmatpush1.msra.mxu0 0.0
        %1672 = vmatprep.subr.mxu0 0.0
        %1673 = vmatpush1.msra.mxu0 0.0
        %1674 = vmatprep.subr.mxu0 0.0
        %1675 = vmatpush1.msra.mxu0 0.0
        %1676 = vmatprep.subr.mxu0 0.0
        %1677 = vmatpush1.msra.mxu0 0.0
        %1678 = vmatprep.subr.mxu0 0.0
        %1679 = vmatpush1.msra.mxu0 0.0
        %1680 = vmatprep.subr.mxu0 0.0
        %1681 = vmatpush1.msra.mxu0 0.0
        %1682 = vmatprep.subr.mxu0 0.0
        %1683 = vmatpush1.msra.mxu0 0.0
        %1684 = vmatprep.subr.mxu0 0.0
        %1685 = vmatpush1.msra.mxu0 0.0
        %1686 = vmatprep.subr.mxu0 0.0
        %1687 = vmatpush1.msra.mxu0 0.0
        %1688 = vmatprep.subr.mxu0 0.0
        %1689 = vmatpush1.msra.mxu0 0.0
        %1690 = vmatprep.subr.mxu0 0.0
        %1691 = vmatpush1.msra.mxu0 0.0
        %1692 = vmatprep.subr.mxu0 0.0
        %1693 = vmatpush1.msra.mxu0 0.0
        %1694 = vmatprep.mubr.f32.mxu0 0.0
        %1695 = vmatmul.mubr.f32.gmra.mrb[0].mxu0 %v1628
        %v1696 = vpop.f32.mrb[0].mxu0
        %v1697 = vadd.f32 0.0, %v1696
        %v1698 = vpop.f32.mrb[0].mxu0
        %v1699 = vadd.f32 0.0, %v1698
        %1700 = vdwg.mxu0
        %v1703 = vcombine.low %v1697, %v1699
        %v1705 = vadd.f32 %v1155, %v1703
        %s1706 = scalar_lea.vmem %s6, 2
        %v1707 = vld [vmem:[%s1706] sm:$0x3]
        %1709 = vset.pattern.permute.xlu0 0
        %1710 = vperm.xlu0 %1709, %v1707
        %v1711 = vpop.permute.xlu0 %1710
        %v1713 = vunpack.c.l.s4 839922192
        %v1714 = vunpack.c.0.s8 %v1713
        %v1715 = vlaneseq
        %v1716 = vshrl.u32 %v1715, 7
        %v1717 = vsub.s32 %v1714, %v1716
        %v1718 = vrot.slane %v1711, %v1717
        %v1720 = vadd.f32 %v1705, %v1718
        %s1721 = scalar_lea.vmem %s7, 64
        %v1722 = vld [vmem:[%s1721] sm:$0xff]
        %v1723 = vld [vmem:[%s1721 + $0x8] sm:$0xff]
        %v1724 = vld [vmem:[%s1721 + $0x10] sm:$0xff]
        %v1725 = vld [vmem:[%s1721 + $0x18] sm:$0xff]
        %v1726 = vld [vmem:[%s1721 + $0x20] sm:$0xff]
        %v1727 = vld [vmem:[%s1721 + $0x28] sm:$0xff]
        %v1728 = vld [vmem:[%s1721 + $0x30] sm:$0xff]
        %v1729 = vld [vmem:[%s1721 + $0x38] sm:$0xff]
        %v1731 = vcombine.high %v1720, %v1720
        %v1733 = vsel %vm946, %v1722, 0
        %v1736 = vsel %vm946, %v1723, 0
        %v1739 = vsel %vm946, %v1724, 0
        %v1742 = vsel %vm946, %v1725, 0
        %v1745 = vsel %vm946, %v1726, 0
        %v1748 = vsel %vm946, %v1727, 0
        %v1751 = vsel %vm946, %v1728, 0
        %v1754 = vsel %vm946, %v1729, 0
        %v1756 = vsel %vm959, %v1720, 0
        %v1758 = vsel %vm959, %v1731, 0
        %1760 = vmatprep.subr.mxu0 %v1758
        %1761 = vmatpush1.msra.mxu0 %v1756
        %1762 = vmatprep.subr.mxu0 0.0
        %1763 = vmatpush1.msra.mxu0 0.0
        %1764 = vmatprep.subr.mxu0 0.0
        %1765 = vmatpush1.msra.mxu0 0.0
        %1766 = vmatprep.subr.mxu0 0.0
        %1767 = vmatpush1.msra.mxu0 0.0
        %1768 = vmatprep.subr.mxu0 0.0
        %1769 = vmatpush1.msra.mxu0 0.0
        %1770 = vmatprep.subr.mxu0 0.0
        %1771 = vmatpush1.msra.mxu0 0.0
        %1772 = vmatprep.subr.mxu0 0.0
        %1773 = vmatpush1.msra.mxu0 0.0
        %1774 = vmatprep.subr.mxu0 0.0
        %1775 = vmatpush1.msra.mxu0 0.0
        %1776 = vmatprep.subr.mxu0 0.0
        %1777 = vmatpush1.msra.mxu0 0.0
        %1778 = vmatprep.subr.mxu0 0.0
        %1779 = vmatpush1.msra.mxu0 0.0
        %1780 = vmatprep.subr.mxu0 0.0
        %1781 = vmatpush1.msra.mxu0 0.0
        %1782 = vmatprep.subr.mxu0 0.0
        %1783 = vmatpush1.msra.mxu0 0.0
        %1784 = vmatprep.subr.mxu0 0.0
        %1785 = vmatpush1.msra.mxu0 0.0
        %1786 = vmatprep.subr.mxu0 0.0
        %1787 = vmatpush1.msra.mxu0 0.0
        %1788 = vmatprep.subr.mxu0 0.0
        %1789 = vmatpush1.msra.mxu0 0.0
        %1790 = vmatprep.subr.mxu0 0.0
        %1791 = vmatpush1.msra.mxu0 0.0
        %1792 = vmatprep.subr.mxu0 0.0
        %1793 = vmatpush1.msra.mxu0 0.0
        %1794 = vmatprep.subr.mxu0 0.0
        %1795 = vmatpush1.msra.mxu0 0.0
        %1796 = vmatprep.subr.mxu0 0.0
        %1797 = vmatpush1.msra.mxu0 0.0
        %1798 = vmatprep.subr.mxu0 0.0
        %1799 = vmatpush1.msra.mxu0 0.0
        %1800 = vmatprep.subr.mxu0 0.0
        %1801 = vmatpush1.msra.mxu0 0.0
        %1802 = vmatprep.subr.mxu0 0.0
        %1803 = vmatpush1.msra.mxu0 0.0
        %1804 = vmatprep.subr.mxu0 0.0
        %1805 = vmatpush1.msra.mxu0 0.0
        %1806 = vmatprep.subr.mxu0 0.0
        %1807 = vmatpush1.msra.mxu0 0.0
        %1808 = vmatprep.subr.mxu0 0.0
        %1809 = vmatpush1.msra.mxu0 0.0
        %1810 = vmatprep.subr.mxu0 0.0
        %1811 = vmatpush1.msra.mxu0 0.0
        %1812 = vmatprep.subr.mxu0 0.0
        %1813 = vmatpush1.msra.mxu0 0.0
        %1814 = vmatprep.subr.mxu0 0.0
        %1815 = vmatpush1.msra.mxu0 0.0
        %1816 = vmatprep.subr.mxu0 0.0
        %1817 = vmatpush1.msra.mxu0 0.0
        %1818 = vmatprep.subr.mxu0 0.0
        %1819 = vmatpush1.msra.mxu0 0.0
        %1820 = vmatprep.subr.mxu0 0.0
        %1821 = vmatpush1.msra.mxu0 0.0
        %1822 = vmatprep.subr.mxu0 0.0
        %1823 = vmatpush1.msra.mxu0 0.0
        %1824 = vmatprep.mubr.f32.mxu0 0.0
        %1825 = vmatmul.mubr.f32.gmra.mrb[0].mxu0 %v1733
        %v1826 = vpop.f32.mrb[0].mxu0
        %v1827 = vadd.f32 %v892, %v1826
        %v1828 = vpop.f32.mrb[0].mxu0
        %v1829 = vadd.f32 %v894, %v1828
        %1830 = vmatprep.mubr.f32.mxu0 0.0
        %1831 = vmatmul.mubr.f32.gmra.mrb[0].mxu0 %v1736
        %v1832 = vpop.f32.mrb[0].mxu0
        %v1833 = vadd.f32 %v898, %v1832
        %v1834 = vpop.f32.mrb[0].mxu0
        %v1835 = vadd.f32 %v900, %v1834
        %1836 = vmatprep.mubr.f32.mxu0 0.0
        %1837 = vmatmul.mubr.f32.gmra.mrb[0].mxu0 %v1739
        %v1838 = vpop.f32.mrb[0].mxu0
        %v1839 = vadd.f32 %v904, %v1838
        %v1840 = vpop.f32.mrb[0].mxu0
        %v1841 = vadd.f32 %v906, %v1840
        %1842 = vmatprep.mubr.f32.mxu0 0.0
        %1843 = vmatmul.mubr.f32.gmra.mrb[0].mxu0 %v1742
        %v1844 = vpop.f32.mrb[0].mxu0
        %v1845 = vadd.f32 %v910, %v1844
        %v1846 = vpop.f32.mrb[0].mxu0
        %v1847 = vadd.f32 %v912, %v1846
        %1848 = vmatprep.mubr.f32.mxu0 0.0
        %1849 = vmatmul.mubr.f32.gmra.mrb[0].mxu0 %v1745
        %v1850 = vpop.f32.mrb[0].mxu0
        %v1851 = vadd.f32 %v916, %v1850
        %v1852 = vpop.f32.mrb[0].mxu0
        %v1853 = vadd.f32 %v918, %v1852
        %1854 = vmatprep.mubr.f32.mxu0 0.0
        %1855 = vmatmul.mubr.f32.gmra.mrb[0].mxu0 %v1748
        %v1856 = vpop.f32.mrb[0].mxu0
        %v1857 = vadd.f32 %v922, %v1856
        %v1858 = vpop.f32.mrb[0].mxu0
        %v1859 = vadd.f32 %v924, %v1858
        %1860 = vmatprep.mubr.f32.mxu0 0.0
        %1861 = vmatmul.mubr.f32.gmra.mrb[0].mxu0 %v1751
        %v1862 = vpop.f32.mrb[0].mxu0
        %v1863 = vadd.f32 %v928, %v1862
        %v1864 = vpop.f32.mrb[0].mxu0
        %v1865 = vadd.f32 %v930, %v1864
        %1866 = vmatprep.mubr.f32.mxu0 0.0
        %1867 = vmatmul.mubr.f32.gmra.mrb[0].mxu0 %v1754
        %v1868 = vpop.f32.mrb[0].mxu0
        %v1869 = vadd.f32 %v934, %v1868
        %v1870 = vpop.f32.mrb[0].mxu0
        %v1871 = vadd.f32 %v936, %v1870
        %1872 = vdwg.mxu0
        %v1873 = vmax.f32 %v1827, 0.0
        %v1874 = vmax.f32 %v1829, 0.0
        %v1875 = vmax.f32 %v1833, 0.0
        %v1876 = vmax.f32 %v1835, 0.0
        %v1877 = vmax.f32 %v1839, 0.0
        %v1878 = vmax.f32 %v1841, 0.0
        %v1879 = vmax.f32 %v1845, 0.0
        %v1880 = vmax.f32 %v1847, 0.0
        %v1881 = vmax.f32 %v1851, 0.0
        %v1882 = vmax.f32 %v1853, 0.0
        %v1883 = vmax.f32 %v1857, 0.0
        %v1884 = vmax.f32 %v1859, 0.0
        %v1885 = vmax.f32 %v1863, 0.0
        %v1886 = vmax.f32 %v1865, 0.0
        %v1887 = vmax.f32 %v1869, 0.0
        %v1888 = vmax.f32 %v1871, 0.0
        %s1889 = scalar_lea.vmem %s8, 2
        %v1890 = vld [vmem:[%s1889] sm:$0x3]
        %s1891 = scalar_lea.vmem %s9, 2
        %v1892 = vld [vmem:[%s1891] sm:$0x3]
        %1894 = vset.pattern.permute.xlu0 0
        %1895 = vperm.xlu0 %1894, %v1892
        %v1896 = vpop.permute.xlu0 %1895
        %v1899 = vsel %vm1062, %v1890, 0
        %1901 = vmatprep.subr.mxu0 %v1874
        %1902 = vmatpush1.msra.mxu0 %v1873
        %1903 = vmatprep.subr.mxu0 %v1876
        %1904 = vmatpush1.msra.mxu0 %v1875
        %1905 = vmatprep.subr.mxu0 %v1878
        %1906 = vmatpush1.msra.mxu0 %v1877
        %1907 = vmatprep.subr.mxu0 %v1880
        %1908 = vmatpush1.msra.mxu0 %v1879
        %1909 = vmatprep.subr.mxu0 0.0
        %1910 = vmatpush1.msra.mxu0 0.0
        %1911 = vmatprep.subr.mxu0 0.0
        %1912 = vmatpush1.msra.mxu0 0.0
        %1913 = vmatprep.subr.mxu0 0.0
        %1914 = vmatpush1.msra.mxu0 0.0
        %1915 = vmatprep.subr.mxu0 0.0
        %1916 = vmatpush1.msra.mxu0 0.0
        %1917 = vmatprep.subr.mxu0 0.0
        %1918 = vmatpush1.msra.mxu0 0.0
        %1919 = vmatprep.subr.mxu0 0.0
        %1920 = vmatpush1.msra.mxu0 0.0
        %1921 = vmatprep.subr.mxu0 0.0
        %1922 = vmatpush1.msra.mxu0 0.0
        %1923 = vmatprep.subr.mxu0 0.0
        %1924 = vmatpush1.msra.mxu0 0.0
        %1925 = vmatprep.subr.mxu0 0.0
        %1926 = vmatpush1.msra.mxu0 0.0
        %1927 = vmatprep.subr.mxu0 0.0
        %1928 = vmatpush1.msra.mxu0 0.0
        %1929 = vmatprep.subr.mxu0 0.0
        %1930 = vmatpush1.msra.mxu0 0.0
        %1931 = vmatprep.subr.mxu0 0.0
        %1932 = vmatpush1.msra.mxu0 0.0
        %1933 = vmatprep.subr.mxu0 0.0
        %1934 = vmatpush1.msra.mxu0 0.0
        %1935 = vmatprep.subr.mxu0 0.0
        %1936 = vmatpush1.msra.mxu0 0.0
        %1937 = vmatprep.subr.mxu0 0.0
        %1938 = vmatpush1.msra.mxu0 0.0
        %1939 = vmatprep.subr.mxu0 0.0
        %1940 = vmatpush1.msra.mxu0 0.0
        %1941 = vmatprep.subr.mxu0 0.0
        %1942 = vmatpush1.msra.mxu0 0.0
        %1943 = vmatprep.subr.mxu0 0.0
        %1944 = vmatpush1.msra.mxu0 0.0
        %1945 = vmatprep.subr.mxu0 0.0
        %1946 = vmatpush1.msra.mxu0 0.0
        %1947 = vmatprep.subr.mxu0 0.0
        %1948 = vmatpush1.msra.mxu0 0.0
        %1949 = vmatprep.subr.mxu0 0.0
        %1950 = vmatpush1.msra.mxu0 0.0
        %1951 = vmatprep.subr.mxu0 0.0
        %1952 = vmatpush1.msra.mxu0 0.0
        %1953 = vmatprep.subr.mxu0 0.0
        %1954 = vmatpush1.msra.mxu0 0.0
        %1955 = vmatprep.subr.mxu0 0.0
        %1956 = vmatpush1.msra.mxu0 0.0
        %1957 = vmatprep.subr.mxu0 0.0
        %1958 = vmatpush1.msra.mxu0 0.0
        %1959 = vmatprep.subr.mxu0 0.0
        %1960 = vmatpush1.msra.mxu0 0.0
        %1961 = vmatprep.subr.mxu0 0.0
        %1962 = vmatpush1.msra.mxu0 0.0
        %1963 = vmatprep.subr.mxu0 0.0
        %1964 = vmatpush1.msra.mxu0 0.0
        %1965 = vmatprep.mubr.f32.mxu0 0.0
        %1966 = vmatmul.mubr.f32.gmra.mrb[0].mxu0 %v1899
        %v1967 = vpop.f32.mrb[0].mxu0
        %v1968 = vadd.f32 %v1896, %v1967
        %v1969 = vpop.f32.mrb[0].mxu0
        %v1970 = vadd.f32 %v1896, %v1969
        %1971 = vdwg.mxu0
        %s1972 = scalar_lea.vmem %s10, 2
        %v1973 = vld [vmem:[%s1972] sm:$0x3]
        %s1974 = scalar_lea.vmem %s11, 2
        %v1975 = vld [vmem:[%s1974] sm:$0x3]
        %1977 = vset.pattern.permute.xlu0 0
        %1978 = vperm.xlu0 %1977, %v1975
        %v1979 = vpop.permute.xlu0 %1978
        %v1982 = vsel %vm1062, %v1973, 0
        %1984 = vmatprep.subr.mxu0 %v1882
        %1985 = vmatpush1.msra.mxu0 %v1881
        %1986 = vmatprep.subr.mxu0 %v1884
        %1987 = vmatpush1.msra.mxu0 %v1883
        %1988 = vmatprep.subr.mxu0 %v1886
        %1989 = vmatpush1.msra.mxu0 %v1885
        %1990 = vmatprep.subr.mxu0 %v1888
        %1991 = vmatpush1.msra.mxu0 %v1887
        %1992 = vmatprep.subr.mxu0 0.0
        %1993 = vmatpush1.msra.mxu0 0.0
        %1994 = vmatprep.subr.mxu0 0.0
        %1995 = vmatpush1.msra.mxu0 0.0
        %1996 = vmatprep.subr.mxu0 0.0
        %1997 = vmatpush1.msra.mxu0 0.0
        %1998 = vmatprep.subr.mxu0 0.0
        %1999 = vmatpush1.msra.mxu0 0.0
        %2000 = vmatprep.subr.mxu0 0.0
        %2001 = vmatpush1.msra.mxu0 0.0
        %2002 = vmatprep.subr.mxu0 0.0
        %2003 = vmatpush1.msra.mxu0 0.0
        %2004 = vmatprep.subr.mxu0 0.0
        %2005 = vmatpush1.msra.mxu0 0.0
        %2006 = vmatprep.subr.mxu0 0.0
        %2007 = vmatpush1.msra.mxu0 0.0
        %2008 = vmatprep.subr.mxu0 0.0
        %2009 = vmatpush1.msra.mxu0 0.0
        %2010 = vmatprep.subr.mxu0 0.0
        %2011 = vmatpush1.msra.mxu0 0.0
        %2012 = vmatprep.subr.mxu0 0.0
        %2013 = vmatpush1.msra.mxu0 0.0
        %2014 = vmatprep.subr.mxu0 0.0
        %2015 = vmatpush1.msra.mxu0 0.0
        %2016 = vmatprep.subr.mxu0 0.0
        %2017 = vmatpush1.msra.mxu0 0.0
        %2018 = vmatprep.subr.mxu0 0.0
        %2019 = vmatpush1.msra.mxu0 0.0
        %2020 = vmatprep.subr.mxu0 0.0
        %2021 = vmatpush1.msra.mxu0 0.0
        %2022 = vmatprep.subr.mxu0 0.0
        %2023 = vmatpush1.msra.mxu0 0.0
        %2024 = vmatprep.subr.mxu0 0.0
        %2025 = vmatpush1.msra.mxu0 0.0
        %2026 = vmatprep.subr.mxu0 0.0
        %2027 = vmatpush1.msra.mxu0 0.0
        %2028 = vmatprep.subr.mxu0 0.0
        %2029 = vmatpush1.msra.mxu0 0.0
        %2030 = vmatprep.subr.mxu0 0.0
        %2031 = vmatpush1.msra.mxu0 0.0
        %2032 = vmatprep.subr.mxu0 0.0
        %2033 = vmatpush1.msra.mxu0 0.0
        %2034 = vmatprep.subr.mxu0 0.0
        %2035 = vmatpush1.msra.mxu0 0.0
        %2036 = vmatprep.subr.mxu0 0.0
        %2037 = vmatpush1.msra.mxu0 0.0
        %2038 = vmatprep.subr.mxu0 0.0
        %2039 = vmatpush1.msra.mxu0 0.0
        %2040 = vmatprep.subr.mxu0 0.0
        %2041 = vmatpush1.msra.mxu0 0.0
        %2042 = vmatprep.subr.mxu0 0.0
        %2043 = vmatpush1.msra.mxu0 0.0
        %2044 = vmatprep.subr.mxu0 0.0
        %2045 = vmatpush1.msra.mxu0 0.0
        %2046 = vmatprep.subr.mxu0 0.0
        %2047 = vmatpush1.msra.mxu0 0.0
        %2048 = vmatprep.mubr.f32.mxu0 0.0
        %2049 = vmatmul.mubr.f32.gmra.mrb[0].mxu0 %v1982
        %v2050 = vpop.f32.mrb[0].mxu0
        %v2051 = vadd.f32 %v1979, %v2050
        %v2052 = vpop.f32.mrb[0].mxu0
        %v2053 = vadd.f32 %v1979, %v2052
        %2054 = vdwg.mxu0
        %v2055 = vtanh.pop %v1968
        %v2056 = vtanh.pop %v1970
        %v2057 = vmul.f32 %v2055, 1.442695
        %v2058 = vpow.pop %v2057
        %v2059 = vmul.f32 %v2056, 1.442695
        %v2060 = vpow.pop %v2059
        %v2063 = vcombine.low %v2058, %v2060
        %v2064 = vrot.slane %v2063, 6
        %v2066 = vmul.f32 %v1502, %v2064
        %v2069 = vcombine.low %v2051, %v2053
        %v2070 = vrot.slane %v2069, 6
        %v2072 = vadd.f32 %v2066, %v2070
        %v2075 = vcombine.high %v2072, %v2072
        %v2077 = vsel %vm959, %v1720, %v2072
        %v2078 = vsel %vm959, %v1731, %v2075
        %v2081 = vcombine.low %v2077, %v2078
        %2083 = vst [vmem:[%s457] sm:$0xff] %v2081
        %s2084 = sand.u32 %s314, 1
        %s2085 = scalar_lea.sflag [#allocation3], %s2084
        %s2086 = sand.u32 %s314, 1
        %s2087 = smul.addr %s2086, 8
        %s2088 = scalar_lea.vmem [#allocation2], %s2087
        // Predicated region
        $region69: #{tpu_custom_call.1} parent=67 // pred_check
          %p2089 = pneg %p324
        $region70: #{tpu_custom_call.1} parent=67 // pred_check_branch
          %2091 = sbr.rel (%p2089) target = $region72
        $region71: #{tpu_custom_call.1} parent=67 // pred_region
          %s2092 = smul.u32 2, %s31
          %s2094 = ssub.s32 128, 128
          %2095 = vsyncadd %s2085, %s2094
          %s2096 = smul.addr %s30, 2
          %s2097 = sadd.s32 %s2092, %s2096
          %s2098 = smul.addr %s2097, 64
          %s2099 = scalar_lea.hbm %s12, %s2098
          %s2101 = sshll.u32 %s2088, 4
          %s2102 = int_to_ptr.vmem [resolvable:$true] %s2101
          %2104 = dma.vmem_to_hbm [thread:$0]  %s2102, 128, %s2099, %s2085
        $region72: #{tpu_custom_call.1} parent=67 // pred_fallthru
          _
      $region68: #{tpu_custom_call.1} parent=5 // pred_fallthru
        _
      %p2105 = scmp.le.s32.totalorder 2, %s21
      // Predicated region
      $region73: #{tpu_custom_call.1} parent=5 // pred_check
        %p2106 = pneg %p2105
      $region74: #{tpu_custom_call.1} parent=5 // pred_check_branch
        %2108 = sbr.rel (%p2106) target = $region76
      $region75: #{tpu_custom_call.1} parent=5 // pred_region
        %s2109 = ssub.s32 %s21, 2
        // Predicated region
        $region77: #{tpu_custom_call.1} parent=75 // pred_check
          %p2110 = pneg %p330
        $region78: #{tpu_custom_call.1} parent=75 // pred_check_branch
          %2112 = sbr.rel (%p2110) target = $region80
        $region79: #{tpu_custom_call.1} parent=75 // pred_region
          %s2113 = sand.u32 %s315, 1
          %s2114 = scalar_lea.sflag [#allocation3], %s2113
          %s2115 = sand.u32 %s315, 1
          %s2116 = smul.addr %s2115, 8
          %s2117 = scalar_lea.vmem [#allocation2], %s2116
          %2118 = dma.done %s2114, 128
        $region80: #{tpu_custom_call.1} parent=75 // pred_fallthru
          _
      $region76: #{tpu_custom_call.1} parent=5 // pred_fallthru
        _
    $region6: #{tpu_custom_call.1} parent=1 // loop_footer
      %s25 = sadd.s32 1, %s21
    $region7: #{tpu_custom_call.1} parent=1 // loop_footer_branch
      %20 = sbr.rel target = $region3
    $region8: #{tpu_custom_call.1} parent=1 // loop_exit
      _
    %2119 = vsyncpa [#allocation3], 1
    %s2120 = scalar_lea.sflag [#allocation3], 1
    %2121 = vsyncpa %s2120, 1

</llo_original>
